<compile_context>
chip_gen: v5e
topology: v5e:2x2
jax: 0.10.0
libtpu: 0.0.40
codegen_flags: <defaults>
</compile_context>

<pallas_src>
import math

import jax
import jax.numpy as jnp
from jax.experimental import pallas as pl
from jax.experimental.pallas import tpu as pltpu

EPS = 1e-5
NFEAT = 6
CHUNK = 256        # lanes per inner strip in the apply kernel (2 vregs / activation)
STAT_CHUNK = 128   # lanes per inner strip in the stats kernel

# Folded-parameter layout (all algebra pre-applied in the wrapper).
PARAM_ORDER = (
    ("A1d", (2, 6)), ("c1d", (2,)),
    ("A2d", (2, 2)), ("c2d", (2,)),
    ("A3d", (2, 2)), ("c3d", (2,)),
    ("A4d", (1, 2)), ("c4d", (1,)),
    ("A1w", (11, 6)), ("c1w", (11,)),
    ("A2w", (1, 11)), ("c2w", (1,)),
)
SHAPE = dict(PARAM_ORDER)
OFF = {}
_off = 0
for _name, _shape in PARAM_ORDER:
    OFF[_name] = _off
    _off += math.prod(_shape)
NPARAM = _off  # 118


# ---------------------------------------------------------------------------
# Pass 1: shifted per-feature sum / sum-of-squares, accumulated into a fixed
# (2, F, 8, 128) partial per core-slice (lane-chunked VPU adds only).
# ---------------------------------------------------------------------------
def make_stats_kernel(n_chunks):
    def stats_kernel(shift_ref, x_ref, o_ref):
        @pl.when(pl.program_id(1) == 0)
        def _init():
            o_ref[...] = jnp.zeros_like(o_ref)

        sh = [shift_ref[f] for f in range(NFEAT)]       # hoisted scalar loads
        s = [o_ref[0, 0, f] for f in range(NFEAT)]      # running shifted sums
        q = [o_ref[0, 1, f] for f in range(NFEAT)]      # running shifted sumsq
        for c in range(n_chunks):
            lo = c * STAT_CHUNK
            for f in range(NFEAT):
                xb = x_ref[f, :, lo:lo + STAT_CHUNK] - sh[f]
                s[f] = s[f] + xb
                q[f] = q[f] + xb * xb
        for f in range(NFEAT):
            o_ref[0, 0, f] = s[f]
            o_ref[0, 1, f] = q[f]

    return stats_kernel


# ---------------------------------------------------------------------------
# Pass 2: wide & deep MLP on the BN/sigmoid/final-Linear-folded weights.
# p_ref : SMEM f32[NPARAM]   x_ref : VMEM f32[6, 8, tile_l]   o_ref : f32[8, tile_l]
# ---------------------------------------------------------------------------
def make_apply_kernel(n_chunks, chunk):
    def apply_kernel(p_ref, x_ref, o_ref):
        def w(name, o, i):
            return p_ref[OFF[name] + o * SHAPE[name][1] + i]

        def b(name, o=0):
            return p_ref[OFF[name] + o]

        # Hoist every SMEM scalar load out of the lane-chunk loop.
        A1d = [[w("A1d", o, i) for i in range(6)] for o in range(2)]
        c1d = [b("c1d", o) for o in range(2)]
        A2d = [[w("A2d", o, i) for i in range(2)] for o in range(2)]
        c2d = [b("c2d", o) for o in range(2)]
        A3d = [[w("A3d", o, i) for i in range(2)] for o in range(2)]
        c3d = [b("c3d", o) for o in range(2)]
        A4d = [w("A4d", 0, i) for i in range(2)]
        A1w = [[w("A1w", o, i) for i in range(6)] for o in range(11)]
        c1w = [b("c1w", o) for o in range(11)]
        A2w = [w("A2w", 0, i) for i in range(11)]
        c_out = b("c4d", 0) + b("c2w", 0)   # all remaining biases collapse to one scalar

        def affine(inp, W, bias, o):
            acc = inp[0] * W[o][0]
            for i in range(1, len(inp)):
                acc = acc + inp[i] * W[o][i]
            return acc + bias[o]

        for c in range(n_chunks):
            lo = c * chunk
            xs = [x_ref[f, :, lo:lo + chunk] for f in range(NFEAT)]   # (8, chunk) each

            # deep branch: tanh-form sigmoid layers; 0.5*wl and bl folded into A4d/c_out.
            t = [jnp.tanh(affine(xs, A1d, c1d, o)) for o in range(2)]
            t = [jnp.tanh(affine(t, A2d, c2d, o)) for o in range(2)]
            t = [jnp.tanh(affine(t, A3d, c3d, o)) for o in range(2)]
            y = t[0] * A4d[0] + t[1] * A4d[1] + c_out

            # wide branch: second layer fused into the neuron loop (single accumulator).
            for k in range(11):
                g = jnp.tanh(affine(xs, A1w, c1w, k))
                y = y + g * A2w[k]

            o_ref[:, lo:lo + chunk] = y

    return apply_kernel


# ---------------------------------------------------------------------------
# Wrapper-side algebra: fold BatchNorm, sigmoid affines, 0.5-combine and the
# final Linear(1,1) into one flat parameter vector (SMEM).
# ---------------------------------------------------------------------------
def fold_params(p, mean, rstd):
    shift = mean * rstd
    w1d = p["w1d"] * rstd[None, :]
    b1d = p["b1d"] - p["w1d"] @ shift
    w1w = p["w1w"] * rstd[None, :]
    b1w = p["b1w"] - p["w1w"] @ shift

    def absorb_sigmoid_input(W, b):
        # This layer's input is h = 0.5 * t + 0.5 where t is the previous tanh.
        return 0.5 * W, b + 0.5 * jnp.sum(W, axis=1)

    wl = p["wl"][0, 0]
    bl = p["bl"][0]

    # deep branch
    A1d, c1d = 0.5 * w1d, 0.5 * b1d
    W, b = absorb_sigmoid_input(p["w2d"], p["b2d"]); A2d, c2d = 0.5 * W, 0.5 * b
    W, b = absorb_sigmoid_input(p["w3d"], p["b3d"]); A3d, c3d = 0.5 * W, 0.5 * b
    W, b = absorb_sigmoid_input(p["w4d"], p["b4d"])
    A4d = (0.5 * wl) * W
    c4d = (0.5 * wl) * b + bl            # final Linear(1,1) bias added exactly once

    # wide branch
    A1w, c1w = 0.5 * w1w, 0.5 * b1w
    W, b = absorb_sigmoid_input(p["w2w"], p["b2w"])
    A2w = (0.5 * wl) * W
    c2w = (0.5 * wl) * b

    vals = dict(A1d=A1d, c1d=c1d, A2d=A2d, c2d=c2d, A3d=A3d, c3d=c3d,
                A4d=A4d, c4d=jnp.reshape(c4d, (1,)),
                A1w=A1w, c1w=c1w, A2w=A2w, c2w=jnp.reshape(c2w, (1,)))
    flat = [vals[n].reshape(-1).astype(jnp.float32) for n, _ in PARAM_ORDER]
    return jnp.concatenate(flat, axis=0)


def iawd_forward(x, params, *, tile_l=2048):
    """x: (B, 6) float32 -> (B, 1) float32."""
    B, F = x.shape
    assert F == NFEAT
    x = x.astype(jnp.float32)

    # Tile sizing: lane length per grid step (multiple of CHUNK), shrunk for
    # small batches so we do not over-pad.
    tile_l = max(CHUNK, (tile_l // CHUNK) * CHUNK)
    L_needed = -(-B // 8)
    L_needed = -(-L_needed // CHUNK) * CHUNK
    if L_needed <= tile_l:
        tile_l = L_needed
        num_tiles = 1
    else:
        num_tiles = -(-L_needed // tile_l)
    ncs = 2 if num_tiles >= 2 else 1          # v7x: split stats pass over both TCs
    num_tiles = ncs * (-(-num_tiles // ncs))
    tiles_per_core = num_tiles // ncs
    L_total = num_tiles * tile_l
    B_pad = 8 * L_total

    # Feature-major, vreg-dense layout: batch spread over (sublane=8, lane=L).
    # Zero padding contributes exactly -shift / shift^2 per padded row to the
    # shifted stats; corrected analytically below.
    xp = jnp.pad(x, ((0, B_pad - B), (0, 0)))
    x3 = xp.T.reshape(NFEAT, 8, L_total)

    shift = x[0]                              # per-feature shift for stable variance

    # ---- pass 1: shifted batch statistics ----------------------------------
    stats = pl.pallas_call(
        make_stats_kernel(tile_l // STAT_CHUNK),
        out_shape=jax.ShapeDtypeStruct((ncs, 2, NFEAT, 8, STAT_CHUNK), jnp.float32),
        grid=(ncs, tiles_per_core),
        in_specs=[
            pl.BlockSpec(memory_space=pltpu.MemorySpace.SMEM),          # shift
            pl.BlockSpec((NFEAT, 8, tile_l),
                         lambda c, t: (0, 0, c * tiles_per_core + t)),  # x tile
        ],
        out_specs=pl.BlockSpec((1, 2, NFEAT, 8, STAT_CHUNK),
                               lambda c, t: (c, 0, 0, 0, 0)),
        compiler_params=pltpu.CompilerParams(
            dimension_semantics=("parallel", "arbitrary"),
            vmem_limit_bytes=32 * 1024 * 1024),
        cost_estimate=pl.CostEstimate(
            flops=int(4 * x3.size), transcendentals=0,
            bytes_accessed=int(4 * (x3.size + 2 * ncs * 2 * NFEAT * 8 * STAT_CHUNK))),
    )(shift, x3)

    s1 = jnp.sum(stats[:, 0], axis=(0, 2, 3))          # (6,) shifted sums
    s2 = jnp.sum(stats[:, 1], axis=(0, 2, 3))          # (6,) shifted sumsq
    npad = float(B_pad - B)
    r1 = s1 + npad * shift                              # remove padded-row contribution
    r2 = s2 - npad * shift * shift
    mean = shift + r1 / B
    var = jnp.maximum(r2 / B - (r1 / B) ** 2, 0.0)      # biased batch variance
    rstd = jax.lax.rsqrt(var + EPS)

    p_all = fold_params(params, mean, rstd)             # (NPARAM,) f32 -> SMEM

    # ---- pass 2: folded wide & deep MLP -------------------------------------
    out8 = pl.pallas_call(
        make_apply_kernel(tile_l // CHUNK, CHUNK),
        out_shape=jax.ShapeDtypeStruct((8, L_total), jnp.float32),
        grid=(num_tiles,),
        in_specs=[
            pl.BlockSpec(memory_space=pltpu.MemorySpace.SMEM),          # params
            pl.BlockSpec((NFEAT, 8, tile_l), lambda t: (0, 0, t)),      # x tile
        ],
        out_specs=pl.BlockSpec((8, tile_l), lambda t: (0, t)),
        compiler_params=pltpu.CompilerParams(
            dimension_semantics=("parallel",),
            vmem_limit_bytes=32 * 1024 * 1024),
        cost_estimate=pl.CostEstimate(
            flops=int(200 * B_pad),
            transcendentals=int(17 * B_pad),
            bytes_accessed=int(4 * (x3.size + 8 * L_total + NPARAM))),
    )(p_all, x3)

    return out8.reshape(B_pad, 1)[:B]


# ---------------------------------------------------------------------------
# Deterministic params + pure-JAX reference (PyTorch semantics)
# ---------------------------------------------------------------------------
def make_params(key):
    def lin(k, fan_in, fan_out):
        kw, kb = jax.random.split(k)
        bound = 1.0 / math.sqrt(fan_in)
        wgt = jax.random.uniform(kw, (fan_out, fan_in), jnp.float32, -bound, bound)
        bias = jax.random.uniform(kb, (fan_out,), jnp.float32, -bound, bound)
        return wgt, bias

    ks = jax.random.split(key, 7)
    p = {}
    p["w1d"], p["b1d"] = lin(ks[0], 6, 2)
    p["w2d"], p["b2d"] = lin(ks[1], 2, 2)
    p["w3d"], p["b3d"] = lin(ks[2], 2, 2)
    p["w4d"], p["b4d"] = lin(ks[3], 2, 1)
    p["w1w"], p["b1w"] = lin(ks[4], 6, 11)
    p["w2w"], p["b2w"] = lin(ks[5], 11, 1)
    p["wl"], p["bl"] = lin(ks[6], 1, 1)
    return p


def iawd_reference(x, p):
    mean = jnp.mean(x, axis=0, keepdims=True)
    var = jnp.mean((x - mean) ** 2, axis=0, keepdims=True)
    xn = (x - mean) / jnp.sqrt(var + EPS)
    sig = jax.nn.sigmoid
    h = sig(xn @ p["w1d"].T + p["b1d"])
    h = sig(h @ p["w2d"].T + p["b2d"])
    h = sig(h @ p["w3d"].T + p["b3d"])
    x1 = h @ p["w4d"].T + p["b4d"]
    g = sig(xn @ p["w1w"].T + p["b1w"])
    x2 = g @ p["w2w"].T + p["b2w"]
    y = 0.5 * x1 + 0.5 * x2
    return y @ p["wl"].T + p["bl"]


if __name__ == "__main__":
    key = jax.random.PRNGKey(0)
    kx, kp = jax.random.split(key)
    params = make_params(kp)

    fwd = jax.jit(iawd_forward, static_argnames=("tile_l",))

    # (B=2000, default tiles) exercises the single-tile padding path;
    # (B=9000, tile_l=512) exercises multiple tiles + the 2-core stats split.
    for B, tl in ((2000, 2048), (9000, 512)):
        x = jax.random.normal(jax.random.fold_in(kx, B), (B, NFEAT),
                              dtype=jnp.float32) * 3.0 + 1.5
        out = jax.block_until_ready(fwd(x, params, tile_l=tl))
        ref = iawd_reference(x, params)
        assert out.shape == (B, 1)
        err = float(jnp.max(jnp.abs(out - ref)))
        # tanh-form sigmoids, folded weights and shifted batch stats differ
        # from the reference only by float32 rounding (~1e-6 scale).
        assert jnp.allclose(out, ref, atol=1e-4, rtol=1e-4), err

    print("KERNEL_OK")
</pallas_src>

<mosaic_0001>
module attributes {stable_mosaic.version = 11 : i64} {
  func.func @stats_kernel(%arg0: i32, %arg1: i32, %arg2: memref<6xf32, #tpu.memory_space<smem>>, %arg3: memref<6x8x256xf32, #tpu.memory_space<vmem>>, %arg4: memref<1x2x6x8x128xf32, #tpu.memory_space<vmem>>) attributes {dimension_semantics = [#tpu.dimension_semantics<parallel>, #tpu.dimension_semantics<arbitrary>], iteration_bounds = array<i64: 1, 1>, scalar_prefetch = 0 : i64, scratch_operands = 0 : i64, tpu.core_type = #tpu.core_type<tc>, window_params = [{transform_indices = @transform_0, window_bounds = array<i64: 6>}, {transform_indices = @transform_1, window_bounds = array<i64: 6, 8, 256>}, {transform_indices = @transform_2, window_bounds = array<i64: 1, 2, 6, 8, 128>}]} {
    %c0_i32 = arith.constant 0 : i32
    %0 = arith.cmpi eq, %arg1, %c0_i32 : i32
    %1 = arith.extui %0 : i1 to i32
    %c0_i32_0 = arith.constant 0 : i32
    %2 = arith.cmpi ne, %1, %c0_i32_0 : i32
    scf.if %2 {
      %cst = arith.constant 0.000000e+00 : f32
      %153 = vector.broadcast %cst : f32 to vector<1x2x6x8x128xf32>
      %c0_156 = arith.constant 0 : index
      %c0_157 = arith.constant 0 : index
      %c0_158 = arith.constant 0 : index
      %c0_159 = arith.constant 0 : index
      %c0_160 = arith.constant 0 : index
      %154 = vector.load %arg4[%c0_156, %c0_157, %c0_158, %c0_159, %c0_160] : memref<1x2x6x8x128xf32, #tpu.memory_space<vmem>>, vector<1x2x6x8x128xf32>
      tpu.vector_store %arg4[%c0_156, %c0_157, %c0_158, %c0_159, %c0_160], %153 {strides = array<i32>} : memref<1x2x6x8x128xf32, #tpu.memory_space<vmem>>, vector<1x2x6x8x128xf32>,
    } else {
    }
    %c0 = arith.constant 0 : index
    %3 = memref.load %arg2[%c0] : memref<6xf32, #tpu.memory_space<smem>>
    %c1 = arith.constant 1 : index
    %4 = memref.load %arg2[%c1] : memref<6xf32, #tpu.memory_space<smem>>
    %c2 = arith.constant 2 : index
    %5 = memref.load %arg2[%c2] : memref<6xf32, #tpu.memory_space<smem>>
    %c3 = arith.constant 3 : index
    %6 = memref.load %arg2[%c3] : memref<6xf32, #tpu.memory_space<smem>>
    %c4 = arith.constant 4 : index
    %7 = memref.load %arg2[%c4] : memref<6xf32, #tpu.memory_space<smem>>
    %c5 = arith.constant 5 : index
    %8 = memref.load %arg2[%c5] : memref<6xf32, #tpu.memory_space<smem>>
    %c0_1 = arith.constant 0 : index
    %c0_2 = arith.constant 0 : index
    %c0_3 = arith.constant 0 : index
    %c0_4 = arith.constant 0 : index
    %c0_5 = arith.constant 0 : index
    %9 = vector.load %arg4[%c0_1, %c0_2, %c0_3, %c0_4, %c0_5] : memref<1x2x6x8x128xf32, #tpu.memory_space<vmem>>, vector<1x1x1x8x128xf32>
    %10 = vector.shape_cast %9 : vector<1x1x1x8x128xf32> to vector<8x128xf32>
    %c0_6 = arith.constant 0 : index
    %c0_7 = arith.constant 0 : index
    %c1_8 = arith.constant 1 : index
    %c0_9 = arith.constant 0 : index
    %c0_10 = arith.constant 0 : index
    %11 = vector.load %arg4[%c0_6, %c0_7, %c1_8, %c0_9, %c0_10] : memref<1x2x6x8x128xf32, #tpu.memory_space<vmem>>, vector<1x1x1x8x128xf32>
    %12 = vector.shape_cast %11 : vector<1x1x1x8x128xf32> to vector<8x128xf32>
    %c0_11 = arith.constant 0 : index
    %c0_12 = arith.constant 0 : index
    %c2_13 = arith.constant 2 : index
    %c0_14 = arith.constant 0 : index
    %c0_15 = arith.constant 0 : index
    %13 = vector.load %arg4[%c0_11, %c0_12, %c2_13, %c0_14, %c0_15] : memref<1x2x6x8x128xf32, #tpu.memory_space<vmem>>, vector<1x1x1x8x128xf32>
    %14 = vector.shape_cast %13 : vector<1x1x1x8x128xf32> to vector<8x128xf32>
    %c0_16 = arith.constant 0 : index
    %c0_17 = arith.constant 0 : index
    %c3_18 = arith.constant 3 : index
    %c0_19 = arith.constant 0 : index
    %c0_20 = arith.constant 0 : index
    %15 = vector.load %arg4[%c0_16, %c0_17, %c3_18, %c0_19, %c0_20] : memref<1x2x6x8x128xf32, #tpu.memory_space<vmem>>, vector<1x1x1x8x128xf32>
    %16 = vector.shape_cast %15 : vector<1x1x1x8x128xf32> to vector<8x128xf32>
    %c0_21 = arith.constant 0 : index
    %c0_22 = arith.constant 0 : index
    %c4_23 = arith.constant 4 : index
    %c0_24 = arith.constant 0 : index
    %c0_25 = arith.constant 0 : index
    %17 = vector.load %arg4[%c0_21, %c0_22, %c4_23, %c0_24, %c0_25] : memref<1x2x6x8x128xf32, #tpu.memory_space<vmem>>, vector<1x1x1x8x128xf32>
    %18 = vector.shape_cast %17 : vector<1x1x1x8x128xf32> to vector<8x128xf32>
    %c0_26 = arith.constant 0 : index
    %c0_27 = arith.constant 0 : index
    %c5_28 = arith.constant 5 : index
    %c0_29 = arith.constant 0 : index
    %c0_30 = arith.constant 0 : index
    %19 = vector.load %arg4[%c0_26, %c0_27, %c5_28, %c0_29, %c0_30] : memref<1x2x6x8x128xf32, #tpu.memory_space<vmem>>, vector<1x1x1x8x128xf32>
    %20 = vector.shape_cast %19 : vector<1x1x1x8x128xf32> to vector<8x128xf32>
    %c0_31 = arith.constant 0 : index
    %c1_32 = arith.constant 1 : index
    %c0_33 = arith.constant 0 : index
    %c0_34 = arith.constant 0 : index
    %c0_35 = arith.constant 0 : index
    %21 = vector.load %arg4[%c0_31, %c1_32, %c0_33, %c0_34, %c0_35] : memref<1x2x6x8x128xf32, #tpu.memory_space<vmem>>, vector<1x1x1x8x128xf32>
    %22 = vector.shape_cast %21 : vector<1x1x1x8x128xf32> to vector<8x128xf32>
    %c0_36 = arith.constant 0 : index
    %c1_37 = arith.constant 1 : index
    %c1_38 = arith.constant 1 : index
    %c0_39 = arith.constant 0 : index
    %c0_40 = arith.constant 0 : index
    %23 = vector.load %arg4[%c0_36, %c1_37, %c1_38, %c0_39, %c0_40] : memref<1x2x6x8x128xf32, #tpu.memory_space<vmem>>, vector<1x1x1x8x128xf32>
    %24 = vector.shape_cast %23 : vector<1x1x1x8x128xf32> to vector<8x128xf32>
    %c0_41 = arith.constant 0 : index
    %c1_42 = arith.constant 1 : index
    %c2_43 = arith.constant 2 : index
    %c0_44 = arith.constant 0 : index
    %c0_45 = arith.constant 0 : index
    %25 = vector.load %arg4[%c0_41, %c1_42, %c2_43, %c0_44, %c0_45] : memref<1x2x6x8x128xf32, #tpu.memory_space<vmem>>, vector<1x1x1x8x128xf32>
    %26 = vector.shape_cast %25 : vector<1x1x1x8x128xf32> to vector<8x128xf32>
    %c0_46 = arith.constant 0 : index
    %c1_47 = arith.constant 1 : index
    %c3_48 = arith.constant 3 : index
    %c0_49 = arith.constant 0 : index
    %c0_50 = arith.constant 0 : index
    %27 = vector.load %arg4[%c0_46, %c1_47, %c3_48, %c0_49, %c0_50] : memref<1x2x6x8x128xf32, #tpu.memory_space<vmem>>, vector<1x1x1x8x128xf32>
    %28 = vector.shape_cast %27 : vector<1x1x1x8x128xf32> to vector<8x128xf32>
    %c0_51 = arith.constant 0 : index
    %c1_52 = arith.constant 1 : index
    %c4_53 = arith.constant 4 : index
    %c0_54 = arith.constant 0 : index
    %c0_55 = arith.constant 0 : index
    %29 = vector.load %arg4[%c0_51, %c1_52, %c4_53, %c0_54, %c0_55] : memref<1x2x6x8x128xf32, #tpu.memory_space<vmem>>, vector<1x1x1x8x128xf32>
    %30 = vector.shape_cast %29 : vector<1x1x1x8x128xf32> to vector<8x128xf32>
    %c0_56 = arith.constant 0 : index
    %c1_57 = arith.constant 1 : index
    %c5_58 = arith.constant 5 : index
    %c0_59 = arith.constant 0 : index
    %c0_60 = arith.constant 0 : index
    %31 = vector.load %arg4[%c0_56, %c1_57, %c5_58, %c0_59, %c0_60] : memref<1x2x6x8x128xf32, #tpu.memory_space<vmem>>, vector<1x1x1x8x128xf32>
    %32 = vector.shape_cast %31 : vector<1x1x1x8x128xf32> to vector<8x128xf32>
    %c0_61 = arith.constant 0 : index
    %c0_62 = arith.constant 0 : index
    %c0_63 = arith.constant 0 : index
    %33 = vector.load %arg3[%c0_61, %c0_62, %c0_63] : memref<6x8x256xf32, #tpu.memory_space<vmem>>, vector<1x8x128xf32>
    %34 = vector.shape_cast %33 : vector<1x8x128xf32> to vector<8x128xf32>
    %35 = vector.broadcast %3 : f32 to vector<8x128xf32>
    %36 = arith.subf %34, %35 : vector<8x128xf32>
    %37 = arith.addf %10, %36 : vector<8x128xf32>
    %38 = arith.mulf %36, %36 : vector<8x128xf32>
    %39 = arith.addf %22, %38 : vector<8x128xf32>
    %c1_64 = arith.constant 1 : index
    %c0_65 = arith.constant 0 : index
    %c0_66 = arith.constant 0 : index
    %40 = vector.load %arg3[%c1_64, %c0_65, %c0_66] : memref<6x8x256xf32, #tpu.memory_space<vmem>>, vector<1x8x128xf32>
    %41 = vector.shape_cast %40 : vector<1x8x128xf32> to vector<8x128xf32>
    %42 = vector.broadcast %4 : f32 to vector<8x128xf32>
    %43 = arith.subf %41, %42 : vector<8x128xf32>
    %44 = arith.addf %12, %43 : vector<8x128xf32>
    %45 = arith.mulf %43, %43 : vector<8x128xf32>
    %46 = arith.addf %24, %45 : vector<8x128xf32>
    %c2_67 = arith.constant 2 : index
    %c0_68 = arith.constant 0 : index
    %c0_69 = arith.constant 0 : index
    %47 = vector.load %arg3[%c2_67, %c0_68, %c0_69] : memref<6x8x256xf32, #tpu.memory_space<vmem>>, vector<1x8x128xf32>
    %48 = vector.shape_cast %47 : vector<1x8x128xf32> to vector<8x128xf32>
    %49 = vector.broadcast %5 : f32 to vector<8x128xf32>
    %50 = arith.subf %48, %49 : vector<8x128xf32>
    %51 = arith.addf %14, %50 : vector<8x128xf32>
    %52 = arith.mulf %50, %50 : vector<8x128xf32>
    %53 = arith.addf %26, %52 : vector<8x128xf32>
    %c3_70 = arith.constant 3 : index
    %c0_71 = arith.constant 0 : index
    %c0_72 = arith.constant 0 : index
    %54 = vector.load %arg3[%c3_70, %c0_71, %c0_72] : memref<6x8x256xf32, #tpu.memory_space<vmem>>, vector<1x8x128xf32>
    %55 = vector.shape_cast %54 : vector<1x8x128xf32> to vector<8x128xf32>
    %56 = vector.broadcast %6 : f32 to vector<8x128xf32>
    %57 = arith.subf %55, %56 : vector<8x128xf32>
    %58 = arith.addf %16, %57 : vector<8x128xf32>
    %59 = arith.mulf %57, %57 : vector<8x128xf32>
    %60 = arith.addf %28, %59 : vector<8x128xf32>
    %c4_73 = arith.constant 4 : index
    %c0_74 = arith.constant 0 : index
    %c0_75 = arith.constant 0 : index
    %61 = vector.load %arg3[%c4_73, %c0_74, %c0_75] : memref<6x8x256xf32, #tpu.memory_space<vmem>>, vector<1x8x128xf32>
    %62 = vector.shape_cast %61 : vector<1x8x128xf32> to vector<8x128xf32>
    %63 = vector.broadcast %7 : f32 to vector<8x128xf32>
    %64 = arith.subf %62, %63 : vector<8x128xf32>
    %65 = arith.addf %18, %64 : vector<8x128xf32>
    %66 = arith.mulf %64, %64 : vector<8x128xf32>
    %67 = arith.addf %30, %66 : vector<8x128xf32>
    %c5_76 = arith.constant 5 : index
    %c0_77 = arith.constant 0 : index
    %c0_78 = arith.constant 0 : index
    %68 = vector.load %arg3[%c5_76, %c0_77, %c0_78] : memref<6x8x256xf32, #tpu.memory_space<vmem>>, vector<1x8x128xf32>
    %69 = vector.shape_cast %68 : vector<1x8x128xf32> to vector<8x128xf32>
    %70 = vector.broadcast %8 : f32 to vector<8x128xf32>
    %71 = arith.subf %69, %70 : vector<8x128xf32>
    %72 = arith.addf %20, %71 : vector<8x128xf32>
    %73 = arith.mulf %71, %71 : vector<8x128xf32>
    %74 = arith.addf %32, %73 : vector<8x128xf32>
    %c0_79 = arith.constant 0 : index
    %c0_80 = arith.constant 0 : index
    %c128 = arith.constant 128 : index
    %75 = vector.load %arg3[%c0_79, %c0_80, %c128] : memref<6x8x256xf32, #tpu.memory_space<vmem>>, vector<1x8x128xf32>
    %76 = vector.shape_cast %75 : vector<1x8x128xf32> to vector<8x128xf32>
    %77 = vector.broadcast %3 : f32 to vector<8x128xf32>
    %78 = arith.subf %76, %77 : vector<8x128xf32>
    %79 = arith.addf %37, %78 : vector<8x128xf32>
    %80 = arith.mulf %78, %78 : vector<8x128xf32>
    %81 = arith.addf %39, %80 : vector<8x128xf32>
    %c1_81 = arith.constant 1 : index
    %c0_82 = arith.constant 0 : index
    %c128_83 = arith.constant 128 : index
    %82 = vector.load %arg3[%c1_81, %c0_82, %c128_83] : memref<6x8x256xf32, #tpu.memory_space<vmem>>, vector<1x8x128xf32>
    %83 = vector.shape_cast %82 : vector<1x8x128xf32> to vector<8x128xf32>
    %84 = vector.broadcast %4 : f32 to vector<8x128xf32>
    %85 = arith.subf %83, %84 : vector<8x128xf32>
    %86 = arith.addf %44, %85 : vector<8x128xf32>
    %87 = arith.mulf %85, %85 : vector<8x128xf32>
    %88 = arith.addf %46, %87 : vector<8x128xf32>
    %c2_84 = arith.constant 2 : index
    %c0_85 = arith.constant 0 : index
    %c128_86 = arith.constant 128 : index
    %89 = vector.load %arg3[%c2_84, %c0_85, %c128_86] : memref<6x8x256xf32, #tpu.memory_space<vmem>>, vector<1x8x128xf32>
    %90 = vector.shape_cast %89 : vector<1x8x128xf32> to vector<8x128xf32>
    %91 = vector.broadcast %5 : f32 to vector<8x128xf32>
    %92 = arith.subf %90, %91 : vector<8x128xf32>
    %93 = arith.addf %51, %92 : vector<8x128xf32>
    %94 = arith.mulf %92, %92 : vector<8x128xf32>
    %95 = arith.addf %53, %94 : vector<8x128xf32>
    %c3_87 = arith.constant 3 : index
    %c0_88 = arith.constant 0 : index
    %c128_89 = arith.constant 128 : index
    %96 = vector.load %arg3[%c3_87, %c0_88, %c128_89] : memref<6x8x256xf32, #tpu.memory_space<vmem>>, vector<1x8x128xf32>
    %97 = vector.shape_cast %96 : vector<1x8x128xf32> to vector<8x128xf32>
    %98 = vector.broadcast %6 : f32 to vector<8x128xf32>
    %99 = arith.subf %97, %98 : vector<8x128xf32>
    %100 = arith.addf %58, %99 : vector<8x128xf32>
    %101 = arith.mulf %99, %99 : vector<8x128xf32>
    %102 = arith.addf %60, %101 : vector<8x128xf32>
    %c4_90 = arith.constant 4 : index
    %c0_91 = arith.constant 0 : index
    %c128_92 = arith.constant 128 : index
    %103 = vector.load %arg3[%c4_90, %c0_91, %c128_92] : memref<6x8x256xf32, #tpu.memory_space<vmem>>, vector<1x8x128xf32>
    %104 = vector.shape_cast %103 : vector<1x8x128xf32> to vector<8x128xf32>
    %105 = vector.broadcast %7 : f32 to vector<8x128xf32>
    %106 = arith.subf %104, %105 : vector<8x128xf32>
    %107 = arith.addf %65, %106 : vector<8x128xf32>
    %108 = arith.mulf %106, %106 : vector<8x128xf32>
    %109 = arith.addf %67, %108 : vector<8x128xf32>
    %c5_93 = arith.constant 5 : index
    %c0_94 = arith.constant 0 : index
    %c128_95 = arith.constant 128 : index
    %110 = vector.load %arg3[%c5_93, %c0_94, %c128_95] : memref<6x8x256xf32, #tpu.memory_space<vmem>>, vector<1x8x128xf32>
    %111 = vector.shape_cast %110 : vector<1x8x128xf32> to vector<8x128xf32>
    %112 = vector.broadcast %8 : f32 to vector<8x128xf32>
    %113 = arith.subf %111, %112 : vector<8x128xf32>
    %114 = arith.addf %72, %113 : vector<8x128xf32>
    %115 = arith.mulf %113, %113 : vector<8x128xf32>
    %116 = arith.addf %74, %115 : vector<8x128xf32>
    %c0_96 = arith.constant 0 : index
    %c0_97 = arith.constant 0 : index
    %c0_98 = arith.constant 0 : index
    %c0_99 = arith.constant 0 : index
    %c0_100 = arith.constant 0 : index
    %117 = vector.load %arg4[%c0_96, %c0_97, %c0_98, %c0_99, %c0_100] : memref<1x2x6x8x128xf32, #tpu.memory_space<vmem>>, vector<1x1x1x8x128xf32>
    %118 = vector.shape_cast %117 : vector<1x1x1x8x128xf32> to vector<8x128xf32>
    %119 = vector.shape_cast %79 : vector<8x128xf32> to vector<1x1x1x8x128xf32>
    tpu.vector_store %arg4[%c0_96, %c0_97, %c0_98, %c0_99, %c0_100], %119 {strides = array<i32>} : memref<1x2x6x8x128xf32, #tpu.memory_space<vmem>>, vector<1x1x1x8x128xf32>,
    %c0_101 = arith.constant 0 : index
    %c1_102 = arith.constant 1 : index
    %c0_103 = arith.constant 0 : index
    %c0_104 = arith.constant 0 : index
    %c0_105 = arith.constant 0 : index
    %120 = vector.load %arg4[%c0_101, %c1_102, %c0_103, %c0_104, %c0_105] : memref<1x2x6x8x128xf32, #tpu.memory_space<vmem>>, vector<1x1x1x8x128xf32>
    %121 = vector.shape_cast %120 : vector<1x1x1x8x128xf32> to vector<8x128xf32>
    %122 = vector.shape_cast %81 : vector<8x128xf32> to vector<1x1x1x8x128xf32>
    tpu.vector_store %arg4[%c0_101, %c1_102, %c0_103, %c0_104, %c0_105], %122 {strides = array<i32>} : memref<1x2x6x8x128xf32, #tpu.memory_space<vmem>>, vector<1x1x1x8x128xf32>,
    %c0_106 = arith.constant 0 : index
    %c0_107 = arith.constant 0 : index
    %c1_108 = arith.constant 1 : index
    %c0_109 = arith.constant 0 : index
    %c0_110 = arith.constant 0 : index
    %123 = vector.load %arg4[%c0_106, %c0_107, %c1_108, %c0_109, %c0_110] : memref<1x2x6x8x128xf32, #tpu.memory_space<vmem>>, vector<1x1x1x8x128xf32>
    %124 = vector.shape_cast %123 : vector<1x1x1x8x128xf32> to vector<8x128xf32>
    %125 = vector.shape_cast %86 : vector<8x128xf32> to vector<1x1x1x8x128xf32>
    tpu.vector_store %arg4[%c0_106, %c0_107, %c1_108, %c0_109, %c0_110], %125 {strides = array<i32>} : memref<1x2x6x8x128xf32, #tpu.memory_space<vmem>>, vector<1x1x1x8x128xf32>,
    %c0_111 = arith.constant 0 : index
    %c1_112 = arith.constant 1 : index
    %c1_113 = arith.constant 1 : index
    %c0_114 = arith.constant 0 : index
    %c0_115 = arith.constant 0 : index
    %126 = vector.load %arg4[%c0_111, %c1_112, %c1_113, %c0_114, %c0_115] : memref<1x2x6x8x128xf32, #tpu.memory_space<vmem>>, vector<1x1x1x8x128xf32>
    %127 = vector.shape_cast %126 : vector<1x1x1x8x128xf32> to vector<8x128xf32>
    %128 = vector.shape_cast %88 : vector<8x128xf32> to vector<1x1x1x8x128xf32>
    tpu.vector_store %arg4[%c0_111, %c1_112, %c1_113, %c0_114, %c0_115], %128 {strides = array<i32>} : memref<1x2x6x8x128xf32, #tpu.memory_space<vmem>>, vector<1x1x1x8x128xf32>,
    %c0_116 = arith.constant 0 : index
    %c0_117 = arith.constant 0 : index
    %c2_118 = arith.constant 2 : index
    %c0_119 = arith.constant 0 : index
    %c0_120 = arith.constant 0 : index
    %129 = vector.load %arg4[%c0_116, %c0_117, %c2_118, %c0_119, %c0_120] : memref<1x2x6x8x128xf32, #tpu.memory_space<vmem>>, vector<1x1x1x8x128xf32>
    %130 = vector.shape_cast %129 : vector<1x1x1x8x128xf32> to vector<8x128xf32>
    %131 = vector.shape_cast %93 : vector<8x128xf32> to vector<1x1x1x8x128xf32>
    tpu.vector_store %arg4[%c0_116, %c0_117, %c2_118, %c0_119, %c0_120], %131 {strides = array<i32>} : memref<1x2x6x8x128xf32, #tpu.memory_space<vmem>>, vector<1x1x1x8x128xf32>,
    %c0_121 = arith.constant 0 : index
    %c1_122 = arith.constant 1 : index
    %c2_123 = arith.constant 2 : index
    %c0_124 = arith.constant 0 : index
    %c0_125 = arith.constant 0 : index
    %132 = vector.load %arg4[%c0_121, %c1_122, %c2_123, %c0_124, %c0_125] : memref<1x2x6x8x128xf32, #tpu.memory_space<vmem>>, vector<1x1x1x8x128xf32>
    %133 = vector.shape_cast %132 : vector<1x1x1x8x128xf32> to vector<8x128xf32>
    %134 = vector.shape_cast %95 : vector<8x128xf32> to vector<1x1x1x8x128xf32>
    tpu.vector_store %arg4[%c0_121, %c1_122, %c2_123, %c0_124, %c0_125], %134 {strides = array<i32>} : memref<1x2x6x8x128xf32, #tpu.memory_space<vmem>>, vector<1x1x1x8x128xf32>,
    %c0_126 = arith.constant 0 : index
    %c0_127 = arith.constant 0 : index
    %c3_128 = arith.constant 3 : index
    %c0_129 = arith.constant 0 : index
    %c0_130 = arith.constant 0 : index
    %135 = vector.load %arg4[%c0_126, %c0_127, %c3_128, %c0_129, %c0_130] : memref<1x2x6x8x128xf32, #tpu.memory_space<vmem>>, vector<1x1x1x8x128xf32>
    %136 = vector.shape_cast %135 : vector<1x1x1x8x128xf32> to vector<8x128xf32>
    %137 = vector.shape_cast %100 : vector<8x128xf32> to vector<1x1x1x8x128xf32>
    tpu.vector_store %arg4[%c0_126, %c0_127, %c3_128, %c0_129, %c0_130], %137 {strides = array<i32>} : memref<1x2x6x8x128xf32, #tpu.memory_space<vmem>>, vector<1x1x1x8x128xf32>,
    %c0_131 = arith.constant 0 : index
    %c1_132 = arith.constant 1 : index
    %c3_133 = arith.constant 3 : index
    %c0_134 = arith.constant 0 : index
    %c0_135 = arith.constant 0 : index
    %138 = vector.load %arg4[%c0_131, %c1_132, %c3_133, %c0_134, %c0_135] : memref<1x2x6x8x128xf32, #tpu.memory_space<vmem>>, vector<1x1x1x8x128xf32>
    %139 = vector.shape_cast %138 : vector<1x1x1x8x128xf32> to vector<8x128xf32>
    %140 = vector.shape_cast %102 : vector<8x128xf32> to vector<1x1x1x8x128xf32>
    tpu.vector_store %arg4[%c0_131, %c1_132, %c3_133, %c0_134, %c0_135], %140 {strides = array<i32>} : memref<1x2x6x8x128xf32, #tpu.memory_space<vmem>>, vector<1x1x1x8x128xf32>,
    %c0_136 = arith.constant 0 : index
    %c0_137 = arith.constant 0 : index
    %c4_138 = arith.constant 4 : index
    %c0_139 = arith.constant 0 : index
    %c0_140 = arith.constant 0 : index
    %141 = vector.load %arg4[%c0_136, %c0_137, %c4_138, %c0_139, %c0_140] : memref<1x2x6x8x128xf32, #tpu.memory_space<vmem>>, vector<1x1x1x8x128xf32>
    %142 = vector.shape_cast %141 : vector<1x1x1x8x128xf32> to vector<8x128xf32>
    %143 = vector.shape_cast %107 : vector<8x128xf32> to vector<1x1x1x8x128xf32>
    tpu.vector_store %arg4[%c0_136, %c0_137, %c4_138, %c0_139, %c0_140], %143 {strides = array<i32>} : memref<1x2x6x8x128xf32, #tpu.memory_space<vmem>>, vector<1x1x1x8x128xf32>,
    %c0_141 = arith.constant 0 : index
    %c1_142 = arith.constant 1 : index
    %c4_143 = arith.constant 4 : index
    %c0_144 = arith.constant 0 : index
    %c0_145 = arith.constant 0 : index
    %144 = vector.load %arg4[%c0_141, %c1_142, %c4_143, %c0_144, %c0_145] : memref<1x2x6x8x128xf32, #tpu.memory_space<vmem>>, vector<1x1x1x8x128xf32>
    %145 = vector.shape_cast %144 : vector<1x1x1x8x128xf32> to vector<8x128xf32>
    %146 = vector.shape_cast %109 : vector<8x128xf32> to vector<1x1x1x8x128xf32>
    tpu.vector_store %arg4[%c0_141, %c1_142, %c4_143, %c0_144, %c0_145], %146 {strides = array<i32>} : memref<1x2x6x8x128xf32, #tpu.memory_space<vmem>>, vector<1x1x1x8x128xf32>,
    %c0_146 = arith.constant 0 : index
    %c0_147 = arith.constant 0 : index
    %c5_148 = arith.constant 5 : index
    %c0_149 = arith.constant 0 : index
    %c0_150 = arith.constant 0 : index
    %147 = vector.load %arg4[%c0_146, %c0_147, %c5_148, %c0_149, %c0_150] : memref<1x2x6x8x128xf32, #tpu.memory_space<vmem>>, vector<1x1x1x8x128xf32>
    %148 = vector.shape_cast %147 : vector<1x1x1x8x128xf32> to vector<8x128xf32>
    %149 = vector.shape_cast %114 : vector<8x128xf32> to vector<1x1x1x8x128xf32>
    tpu.vector_store %arg4[%c0_146, %c0_147, %c5_148, %c0_149, %c0_150], %149 {strides = array<i32>} : memref<1x2x6x8x128xf32, #tpu.memory_space<vmem>>, vector<1x1x1x8x128xf32>,
    %c0_151 = arith.constant 0 : index
    %c1_152 = arith.constant 1 : index
    %c5_153 = arith.constant 5 : index
    %c0_154 = arith.constant 0 : index
    %c0_155 = arith.constant 0 : index
    %150 = vector.load %arg4[%c0_151, %c1_152, %c5_153, %c0_154, %c0_155] : memref<1x2x6x8x128xf32, #tpu.memory_space<vmem>>, vector<1x1x1x8x128xf32>
    %151 = vector.shape_cast %150 : vector<1x1x1x8x128xf32> to vector<8x128xf32>
    %152 = vector.shape_cast %116 : vector<8x128xf32> to vector<1x1x1x8x128xf32>
    tpu.vector_store %arg4[%c0_151, %c1_152, %c5_153, %c0_154, %c0_155], %152 {strides = array<i32>} : memref<1x2x6x8x128xf32, #tpu.memory_space<vmem>>, vector<1x1x1x8x128xf32>,
    return
  }
  func.func @transform_0(%arg0: i32, %arg1: i32) -> i32 {
    %c0_i32 = arith.constant 0 : i32
    %c0_i32_0 = arith.constant 0 : i32
    return %c0_i32 : i32
  }
  func.func @transform_1(%arg0: i32, %arg1: i32) -> (i32, i32, i32) {
    %c1_i32 = arith.constant 1 : i32
    %0 = arith.muli %arg0, %c1_i32 : i32
    %1 = arith.addi %0, %arg1 : i32
    %c0_i32 = arith.constant 0 : i32
    %c0_i32_0 = arith.constant 0 : i32
    %c0_i32_1 = arith.constant 0 : i32
    return %c0_i32, %c0_i32_0, %1 : i32, i32, i32
  }
  func.func @transform_2(%arg0: i32, %arg1: i32) -> (i32, i32, i32, i32, i32) {
    %c0_i32 = arith.constant 0 : i32
    %c0_i32_0 = arith.constant 0 : i32
    %c0_i32_1 = arith.constant 0 : i32
    %c0_i32_2 = arith.constant 0 : i32
    %c0_i32_3 = arith.constant 0 : i32
    return %arg0, %c0_i32, %c0_i32_0, %c0_i32_1, %c0_i32_2 : i32, i32, i32, i32, i32
  }
}

module attributes {stable_mosaic.version = 11 : i64} {
  func.func @apply_kernel(%arg0: i32, %arg1: memref<118xf32, #tpu.memory_space<smem>>, %arg2: memref<6x8x256xf32, #tpu.memory_space<vmem>>, %arg3: memref<8x256xf32, #tpu.memory_space<vmem>>) attributes {dimension_semantics = [#tpu.dimension_semantics<parallel>], iteration_bounds = array<i64: 1>, scalar_prefetch = 0 : i64, scratch_operands = 0 : i64, tpu.core_type = #tpu.core_type<tc>, window_params = [{transform_indices = @transform_0, window_bounds = array<i64: 118>}, {transform_indices = @transform_1, window_bounds = array<i64: 6, 8, 256>}, {transform_indices = @transform_2, window_bounds = array<i64: 8, 256>}]} {
    %c0 = arith.constant 0 : index
    %0 = memref.load %arg1[%c0] : memref<118xf32, #tpu.memory_space<smem>>
    %c1 = arith.constant 1 : index
    %1 = memref.load %arg1[%c1] : memref<118xf32, #tpu.memory_space<smem>>
    %c2 = arith.constant 2 : index
    %2 = memref.load %arg1[%c2] : memref<118xf32, #tpu.memory_space<smem>>
    %c3 = arith.constant 3 : index
    %3 = memref.load %arg1[%c3] : memref<118xf32, #tpu.memory_space<smem>>
    %c4 = arith.constant 4 : index
    %4 = memref.load %arg1[%c4] : memref<118xf32, #tpu.memory_space<smem>>
    %c5 = arith.constant 5 : index
    %5 = memref.load %arg1[%c5] : memref<118xf32, #tpu.memory_space<smem>>
    %c6 = arith.constant 6 : index
    %6 = memref.load %arg1[%c6] : memref<118xf32, #tpu.memory_space<smem>>
    %c7 = arith.constant 7 : index
    %7 = memref.load %arg1[%c7] : memref<118xf32, #tpu.memory_space<smem>>
    %c8 = arith.constant 8 : index
    %8 = memref.load %arg1[%c8] : memref<118xf32, #tpu.memory_space<smem>>
    %c9 = arith.constant 9 : index
    %9 = memref.load %arg1[%c9] : memref<118xf32, #tpu.memory_space<smem>>
    %c10 = arith.constant 10 : index
    %10 = memref.load %arg1[%c10] : memref<118xf32, #tpu.memory_space<smem>>
    %c11 = arith.constant 11 : index
    %11 = memref.load %arg1[%c11] : memref<118xf32, #tpu.memory_space<smem>>
    %c12 = arith.constant 12 : index
    %12 = memref.load %arg1[%c12] : memref<118xf32, #tpu.memory_space<smem>>
    %c13 = arith.constant 13 : index
    %13 = memref.load %arg1[%c13] : memref<118xf32, #tpu.memory_space<smem>>
    %c14 = arith.constant 14 : index
    %14 = memref.load %arg1[%c14] : memref<118xf32, #tpu.memory_space<smem>>
    %c15 = arith.constant 15 : index
    %15 = memref.load %arg1[%c15] : memref<118xf32, #tpu.memory_space<smem>>
    %c16 = arith.constant 16 : index
    %16 = memref.load %arg1[%c16] : memref<118xf32, #tpu.memory_space<smem>>
    %c17 = arith.constant 17 : index
    %17 = memref.load %arg1[%c17] : memref<118xf32, #tpu.memory_space<smem>>
    %c18 = arith.constant 18 : index
    %18 = memref.load %arg1[%c18] : memref<118xf32, #tpu.memory_space<smem>>
    %c19 = arith.constant 19 : index
    %19 = memref.load %arg1[%c19] : memref<118xf32, #tpu.memory_space<smem>>
    %c20 = arith.constant 20 : index
    %20 = memref.load %arg1[%c20] : memref<118xf32, #tpu.memory_space<smem>>
    %c21 = arith.constant 21 : index
    %21 = memref.load %arg1[%c21] : memref<118xf32, #tpu.memory_space<smem>>
    %c22 = arith.constant 22 : index
    %22 = memref.load %arg1[%c22] : memref<118xf32, #tpu.memory_space<smem>>
    %c23 = arith.constant 23 : index
    %23 = memref.load %arg1[%c23] : memref<118xf32, #tpu.memory_space<smem>>
    %c24 = arith.constant 24 : index
    %24 = memref.load %arg1[%c24] : memref<118xf32, #tpu.memory_space<smem>>
    %c25 = arith.constant 25 : index
    %25 = memref.load %arg1[%c25] : memref<118xf32, #tpu.memory_space<smem>>
    %c26 = arith.constant 26 : index
    %26 = memref.load %arg1[%c26] : memref<118xf32, #tpu.memory_space<smem>>
    %c27 = arith.constant 27 : index
    %27 = memref.load %arg1[%c27] : memref<118xf32, #tpu.memory_space<smem>>
    %c29 = arith.constant 29 : index
    %28 = memref.load %arg1[%c29] : memref<118xf32, #tpu.memory_space<smem>>
    %c30 = arith.constant 30 : index
    %29 = memref.load %arg1[%c30] : memref<118xf32, #tpu.memory_space<smem>>
    %c31 = arith.constant 31 : index
    %30 = memref.load %arg1[%c31] : memref<118xf32, #tpu.memory_space<smem>>
    %c32 = arith.constant 32 : index
    %31 = memref.load %arg1[%c32] : memref<118xf32, #tpu.memory_space<smem>>
    %c33 = arith.constant 33 : index
    %32 = memref.load %arg1[%c33] : memref<118xf32, #tpu.memory_space<smem>>
    %c34 = arith.constant 34 : index
    %33 = memref.load %arg1[%c34] : memref<118xf32, #tpu.memory_space<smem>>
    %c35 = arith.constant 35 : index
    %34 = memref.load %arg1[%c35] : memref<118xf32, #tpu.memory_space<smem>>
    %c36 = arith.constant 36 : index
    %35 = memref.load %arg1[%c36] : memref<118xf32, #tpu.memory_space<smem>>
    %c37 = arith.constant 37 : index
    %36 = memref.load %arg1[%c37] : memref<118xf32, #tpu.memory_space<smem>>
    %c38 = arith.constant 38 : index
    %37 = memref.load %arg1[%c38] : memref<118xf32, #tpu.memory_space<smem>>
    %c39 = arith.constant 39 : index
    %38 = memref.load %arg1[%c39] : memref<118xf32, #tpu.memory_space<smem>>
    %c40 = arith.constant 40 : index
    %39 = memref.load %arg1[%c40] : memref<118xf32, #tpu.memory_space<smem>>
    %c41 = arith.constant 41 : index
    %40 = memref.load %arg1[%c41] : memref<118xf32, #tpu.memory_space<smem>>
    %c42 = arith.constant 42 : index
    %41 = memref.load %arg1[%c42] : memref<118xf32, #tpu.memory_space<smem>>
    %c43 = arith.constant 43 : index
    %42 = memref.load %arg1[%c43] : memref<118xf32, #tpu.memory_space<smem>>
    %c44 = arith.constant 44 : index
    %43 = memref.load %arg1[%c44] : memref<118xf32, #tpu.memory_space<smem>>
    %c45 = arith.constant 45 : index
    %44 = memref.load %arg1[%c45] : memref<118xf32, #tpu.memory_space<smem>>
    %c46 = arith.constant 46 : index
    %45 = memref.load %arg1[%c46] : memref<118xf32, #tpu.memory_space<smem>>
    %c47 = arith.constant 47 : index
    %46 = memref.load %arg1[%c47] : memref<118xf32, #tpu.memory_space<smem>>
    %c48 = arith.constant 48 : index
    %47 = memref.load %arg1[%c48] : memref<118xf32, #tpu.memory_space<smem>>
    %c49 = arith.constant 49 : index
    %48 = memref.load %arg1[%c49] : memref<118xf32, #tpu.memory_space<smem>>
    %c50 = arith.constant 50 : index
    %49 = memref.load %arg1[%c50] : memref<118xf32, #tpu.memory_space<smem>>
    %c51 = arith.constant 51 : index
    %50 = memref.load %arg1[%c51] : memref<118xf32, #tpu.memory_space<smem>>
    %c52 = arith.constant 52 : index
    %51 = memref.load %arg1[%c52] : memref<118xf32, #tpu.memory_space<smem>>
    %c53 = arith.constant 53 : index
    %52 = memref.load %arg1[%c53] : memref<118xf32, #tpu.memory_space<smem>>
    %c54 = arith.constant 54 : index
    %53 = memref.load %arg1[%c54] : memref<118xf32, #tpu.memory_space<smem>>
    %c55 = arith.constant 55 : index
    %54 = memref.load %arg1[%c55] : memref<118xf32, #tpu.memory_space<smem>>
    %c56 = arith.constant 56 : index
    %55 = memref.load %arg1[%c56] : memref<118xf32, #tpu.memory_space<smem>>
    %c57 = arith.constant 57 : index
    %56 = memref.load %arg1[%c57] : memref<118xf32, #tpu.memory_space<smem>>
    %c58 = arith.constant 58 : index
    %57 = memref.load %arg1[%c58] : memref<118xf32, #tpu.memory_space<smem>>
    %c59 = arith.constant 59 : index
    %58 = memref.load %arg1[%c59] : memref<118xf32, #tpu.memory_space<smem>>
    %c60 = arith.constant 60 : index
    %59 = memref.load %arg1[%c60] : memref<118xf32, #tpu.memory_space<smem>>
    %c61 = arith.constant 61 : index
    %60 = memref.load %arg1[%c61] : memref<118xf32, #tpu.memory_space<smem>>
    %c62 = arith.constant 62 : index
    %61 = memref.load %arg1[%c62] : memref<118xf32, #tpu.memory_space<smem>>
    %c63 = arith.constant 63 : index
    %62 = memref.load %arg1[%c63] : memref<118xf32, #tpu.memory_space<smem>>
    %c64 = arith.constant 64 : index
    %63 = memref.load %arg1[%c64] : memref<118xf32, #tpu.memory_space<smem>>
    %c65 = arith.constant 65 : index
    %64 = memref.load %arg1[%c65] : memref<118xf32, #tpu.memory_space<smem>>
    %c66 = arith.constant 66 : index
    %65 = memref.load %arg1[%c66] : memref<118xf32, #tpu.memory_space<smem>>
    %c67 = arith.constant 67 : index
    %66 = memref.load %arg1[%c67] : memref<118xf32, #tpu.memory_space<smem>>
    %c68 = arith.constant 68 : index
    %67 = memref.load %arg1[%c68] : memref<118xf32, #tpu.memory_space<smem>>
    %c69 = arith.constant 69 : index
    %68 = memref.load %arg1[%c69] : memref<118xf32, #tpu.memory_space<smem>>
    %c70 = arith.constant 70 : index
    %69 = memref.load %arg1[%c70] : memref<118xf32, #tpu.memory_space<smem>>
    %c71 = arith.constant 71 : index
    %70 = memref.load %arg1[%c71] : memref<118xf32, #tpu.memory_space<smem>>
    %c72 = arith.constant 72 : index
    %71 = memref.load %arg1[%c72] : memref<118xf32, #tpu.memory_space<smem>>
    %c73 = arith.constant 73 : index
    %72 = memref.load %arg1[%c73] : memref<118xf32, #tpu.memory_space<smem>>
    %c74 = arith.constant 74 : index
    %73 = memref.load %arg1[%c74] : memref<118xf32, #tpu.memory_space<smem>>
    %c75 = arith.constant 75 : index
    %74 = memref.load %arg1[%c75] : memref<118xf32, #tpu.memory_space<smem>>
    %c76 = arith.constant 76 : index
    %75 = memref.load %arg1[%c76] : memref<118xf32, #tpu.memory_space<smem>>
    %c77 = arith.constant 77 : index
    %76 = memref.load %arg1[%c77] : memref<118xf32, #tpu.memory_space<smem>>
    %c78 = arith.constant 78 : index
    %77 = memref.load %arg1[%c78] : memref<118xf32, #tpu.memory_space<smem>>
    %c79 = arith.constant 79 : index
    %78 = memref.load %arg1[%c79] : memref<118xf32, #tpu.memory_space<smem>>
    %c80 = arith.constant 80 : index
    %79 = memref.load %arg1[%c80] : memref<118xf32, #tpu.memory_space<smem>>
    %c81 = arith.constant 81 : index
    %80 = memref.load %arg1[%c81] : memref<118xf32, #tpu.memory_space<smem>>
    %c82 = arith.constant 82 : index
    %81 = memref.load %arg1[%c82] : memref<118xf32, #tpu.memory_space<smem>>
    %c83 = arith.constant 83 : index
    %82 = memref.load %arg1[%c83] : memref<118xf32, #tpu.memory_space<smem>>
    %c84 = arith.constant 84 : index
    %83 = memref.load %arg1[%c84] : memref<118xf32, #tpu.memory_space<smem>>
    %c85 = arith.constant 85 : index
    %84 = memref.load %arg1[%c85] : memref<118xf32, #tpu.memory_space<smem>>
    %c86 = arith.constant 86 : index
    %85 = memref.load %arg1[%c86] : memref<118xf32, #tpu.memory_space<smem>>
    %c87 = arith.constant 87 : index
    %86 = memref.load %arg1[%c87] : memref<118xf32, #tpu.memory_space<smem>>
    %c88 = arith.constant 88 : index
    %87 = memref.load %arg1[%c88] : memref<118xf32, #tpu.memory_space<smem>>
    %c89 = arith.constant 89 : index
    %88 = memref.load %arg1[%c89] : memref<118xf32, #tpu.memory_space<smem>>
    %c90 = arith.constant 90 : index
    %89 = memref.load %arg1[%c90] : memref<118xf32, #tpu.memory_space<smem>>
    %c91 = arith.constant 91 : index
    %90 = memref.load %arg1[%c91] : memref<118xf32, #tpu.memory_space<smem>>
    %c92 = arith.constant 92 : index
    %91 = memref.load %arg1[%c92] : memref<118xf32, #tpu.memory_space<smem>>
    %c93 = arith.constant 93 : index
    %92 = memref.load %arg1[%c93] : memref<118xf32, #tpu.memory_space<smem>>
    %c94 = arith.constant 94 : index
    %93 = memref.load %arg1[%c94] : memref<118xf32, #tpu.memory_space<smem>>
    %c95 = arith.constant 95 : index
    %94 = memref.load %arg1[%c95] : memref<118xf32, #tpu.memory_space<smem>>
    %c96 = arith.constant 96 : index
    %95 = memref.load %arg1[%c96] : memref<118xf32, #tpu.memory_space<smem>>
    %c97 = arith.constant 97 : index
    %96 = memref.load %arg1[%c97] : memref<118xf32, #tpu.memory_space<smem>>
    %c98 = arith.constant 98 : index
    %97 = memref.load %arg1[%c98] : memref<118xf32, #tpu.memory_space<smem>>
    %c99 = arith.constant 99 : index
    %98 = memref.load %arg1[%c99] : memref<118xf32, #tpu.memory_space<smem>>
    %c100 = arith.constant 100 : index
    %99 = memref.load %arg1[%c100] : memref<118xf32, #tpu.memory_space<smem>>
    %c101 = arith.constant 101 : index
    %100 = memref.load %arg1[%c101] : memref<118xf32, #tpu.memory_space<smem>>
    %c102 = arith.constant 102 : index
    %101 = memref.load %arg1[%c102] : memref<118xf32, #tpu.memory_space<smem>>
    %c103 = arith.constant 103 : index
    %102 = memref.load %arg1[%c103] : memref<118xf32, #tpu.memory_space<smem>>
    %c104 = arith.constant 104 : index
    %103 = memref.load %arg1[%c104] : memref<118xf32, #tpu.memory_space<smem>>
    %c105 = arith.constant 105 : index
    %104 = memref.load %arg1[%c105] : memref<118xf32, #tpu.memory_space<smem>>
    %c106 = arith.constant 106 : index
    %105 = memref.load %arg1[%c106] : memref<118xf32, #tpu.memory_space<smem>>
    %c107 = arith.constant 107 : index
    %106 = memref.load %arg1[%c107] : memref<118xf32, #tpu.memory_space<smem>>
    %c108 = arith.constant 108 : index
    %107 = memref.load %arg1[%c108] : memref<118xf32, #tpu.memory_space<smem>>
    %c109 = arith.constant 109 : index
    %108 = memref.load %arg1[%c109] : memref<118xf32, #tpu.memory_space<smem>>
    %c110 = arith.constant 110 : index
    %109 = memref.load %arg1[%c110] : memref<118xf32, #tpu.memory_space<smem>>
    %c111 = arith.constant 111 : index
    %110 = memref.load %arg1[%c111] : memref<118xf32, #tpu.memory_space<smem>>
    %c112 = arith.constant 112 : index
    %111 = memref.load %arg1[%c112] : memref<118xf32, #tpu.memory_space<smem>>
    %c113 = arith.constant 113 : index
    %112 = memref.load %arg1[%c113] : memref<118xf32, #tpu.memory_space<smem>>
    %c114 = arith.constant 114 : index
    %113 = memref.load %arg1[%c114] : memref<118xf32, #tpu.memory_space<smem>>
    %c115 = arith.constant 115 : index
    %114 = memref.load %arg1[%c115] : memref<118xf32, #tpu.memory_space<smem>>
    %c116 = arith.constant 116 : index
    %115 = memref.load %arg1[%c116] : memref<118xf32, #tpu.memory_space<smem>>
    %c28 = arith.constant 28 : index
    %116 = memref.load %arg1[%c28] : memref<118xf32, #tpu.memory_space<smem>>
    %c117 = arith.constant 117 : index
    %117 = memref.load %arg1[%c117] : memref<118xf32, #tpu.memory_space<smem>>
    %118 = arith.addf %116, %117 : f32
    %c0_0 = arith.constant 0 : index
    %c0_1 = arith.constant 0 : index
    %c0_2 = arith.constant 0 : index
    %119 = vector.load %arg2[%c0_0, %c0_1, %c0_2] : memref<6x8x256xf32, #tpu.memory_space<vmem>>, vector<1x8x256xf32>
    %120 = vector.shape_cast %119 : vector<1x8x256xf32> to vector<8x256xf32>
    %c1_3 = arith.constant 1 : index
    %c0_4 = arith.constant 0 : index
    %c0_5 = arith.constant 0 : index
    %121 = vector.load %arg2[%c1_3, %c0_4, %c0_5] : memref<6x8x256xf32, #tpu.memory_space<vmem>>, vector<1x8x256xf32>
    %122 = vector.shape_cast %121 : vector<1x8x256xf32> to vector<8x256xf32>
    %c2_6 = arith.constant 2 : index
    %c0_7 = arith.constant 0 : index
    %c0_8 = arith.constant 0 : index
    %123 = vector.load %arg2[%c2_6, %c0_7, %c0_8] : memref<6x8x256xf32, #tpu.memory_space<vmem>>, vector<1x8x256xf32>
    %124 = vector.shape_cast %123 : vector<1x8x256xf32> to vector<8x256xf32>
    %c3_9 = arith.constant 3 : index
    %c0_10 = arith.constant 0 : index
    %c0_11 = arith.constant 0 : index
    %125 = vector.load %arg2[%c3_9, %c0_10, %c0_11] : memref<6x8x256xf32, #tpu.memory_space<vmem>>, vector<1x8x256xf32>
    %126 = vector.shape_cast %125 : vector<1x8x256xf32> to vector<8x256xf32>
    %c4_12 = arith.constant 4 : index
    %c0_13 = arith.constant 0 : index
    %c0_14 = arith.constant 0 : index
    %127 = vector.load %arg2[%c4_12, %c0_13, %c0_14] : memref<6x8x256xf32, #tpu.memory_space<vmem>>, vector<1x8x256xf32>
    %128 = vector.shape_cast %127 : vector<1x8x256xf32> to vector<8x256xf32>
    %c5_15 = arith.constant 5 : index
    %c0_16 = arith.constant 0 : index
    %c0_17 = arith.constant 0 : index
    %129 = vector.load %arg2[%c5_15, %c0_16, %c0_17] : memref<6x8x256xf32, #tpu.memory_space<vmem>>, vector<1x8x256xf32>
    %130 = vector.shape_cast %129 : vector<1x8x256xf32> to vector<8x256xf32>
    %131 = vector.broadcast %0 : f32 to vector<8x256xf32>
    %132 = arith.mulf %120, %131 : vector<8x256xf32>
    %133 = vector.broadcast %1 : f32 to vector<8x256xf32>
    %134 = arith.mulf %122, %133 : vector<8x256xf32>
    %135 = arith.addf %132, %134 : vector<8x256xf32>
    %136 = vector.broadcast %2 : f32 to vector<8x256xf32>
    %137 = arith.mulf %124, %136 : vector<8x256xf32>
    %138 = arith.addf %135, %137 : vector<8x256xf32>
    %139 = vector.broadcast %3 : f32 to vector<8x256xf32>
    %140 = arith.mulf %126, %139 : vector<8x256xf32>
    %141 = arith.addf %138, %140 : vector<8x256xf32>
    %142 = vector.broadcast %4 : f32 to vector<8x256xf32>
    %143 = arith.mulf %128, %142 : vector<8x256xf32>
    %144 = arith.addf %141, %143 : vector<8x256xf32>
    %145 = vector.broadcast %5 : f32 to vector<8x256xf32>
    %146 = arith.mulf %130, %145 : vector<8x256xf32>
    %147 = arith.addf %144, %146 : vector<8x256xf32>
    %148 = vector.broadcast %12 : f32 to vector<8x256xf32>
    %149 = arith.addf %147, %148 : vector<8x256xf32>
    %150 = math.tanh %149 : vector<8x256xf32>
    %151 = vector.broadcast %6 : f32 to vector<8x256xf32>
    %152 = arith.mulf %120, %151 : vector<8x256xf32>
    %153 = vector.broadcast %7 : f32 to vector<8x256xf32>
    %154 = arith.mulf %122, %153 : vector<8x256xf32>
    %155 = arith.addf %152, %154 : vector<8x256xf32>
    %156 = vector.broadcast %8 : f32 to vector<8x256xf32>
    %157 = arith.mulf %124, %156 : vector<8x256xf32>
    %158 = arith.addf %155, %157 : vector<8x256xf32>
    %159 = vector.broadcast %9 : f32 to vector<8x256xf32>
    %160 = arith.mulf %126, %159 : vector<8x256xf32>
    %161 = arith.addf %158, %160 : vector<8x256xf32>
    %162 = vector.broadcast %10 : f32 to vector<8x256xf32>
    %163 = arith.mulf %128, %162 : vector<8x256xf32>
    %164 = arith.addf %161, %163 : vector<8x256xf32>
    %165 = vector.broadcast %11 : f32 to vector<8x256xf32>
    %166 = arith.mulf %130, %165 : vector<8x256xf32>
    %167 = arith.addf %164, %166 : vector<8x256xf32>
    %168 = vector.broadcast %13 : f32 to vector<8x256xf32>
    %169 = arith.addf %167, %168 : vector<8x256xf32>
    %170 = math.tanh %169 : vector<8x256xf32>
    %171 = vector.broadcast %14 : f32 to vector<8x256xf32>
    %172 = arith.mulf %150, %171 : vector<8x256xf32>
    %173 = vector.broadcast %15 : f32 to vector<8x256xf32>
    %174 = arith.mulf %170, %173 : vector<8x256xf32>
    %175 = arith.addf %172, %174 : vector<8x256xf32>
    %176 = vector.broadcast %18 : f32 to vector<8x256xf32>
    %177 = arith.addf %175, %176 : vector<8x256xf32>
    %178 = math.tanh %177 : vector<8x256xf32>
    %179 = vector.broadcast %16 : f32 to vector<8x256xf32>
    %180 = arith.mulf %150, %179 : vector<8x256xf32>
    %181 = vector.broadcast %17 : f32 to vector<8x256xf32>
    %182 = arith.mulf %170, %181 : vector<8x256xf32>
    %183 = arith.addf %180, %182 : vector<8x256xf32>
    %184 = vector.broadcast %19 : f32 to vector<8x256xf32>
    %185 = arith.addf %183, %184 : vector<8x256xf32>
    %186 = math.tanh %185 : vector<8x256xf32>
    %187 = vector.broadcast %20 : f32 to vector<8x256xf32>
    %188 = arith.mulf %178, %187 : vector<8x256xf32>
    %189 = vector.broadcast %21 : f32 to vector<8x256xf32>
    %190 = arith.mulf %186, %189 : vector<8x256xf32>
    %191 = arith.addf %188, %190 : vector<8x256xf32>
    %192 = vector.broadcast %24 : f32 to vector<8x256xf32>
    %193 = arith.addf %191, %192 : vector<8x256xf32>
    %194 = math.tanh %193 : vector<8x256xf32>
    %195 = vector.broadcast %22 : f32 to vector<8x256xf32>
    %196 = arith.mulf %178, %195 : vector<8x256xf32>
    %197 = vector.broadcast %23 : f32 to vector<8x256xf32>
    %198 = arith.mulf %186, %197 : vector<8x256xf32>
    %199 = arith.addf %196, %198 : vector<8x256xf32>
    %200 = vector.broadcast %25 : f32 to vector<8x256xf32>
    %201 = arith.addf %199, %200 : vector<8x256xf32>
    %202 = math.tanh %201 : vector<8x256xf32>
    %203 = vector.broadcast %26 : f32 to vector<8x256xf32>
    %204 = arith.mulf %194, %203 : vector<8x256xf32>
    %205 = vector.broadcast %27 : f32 to vector<8x256xf32>
    %206 = arith.mulf %202, %205 : vector<8x256xf32>
    %207 = arith.addf %204, %206 : vector<8x256xf32>
    %208 = vector.broadcast %118 : f32 to vector<8x256xf32>
    %209 = arith.addf %207, %208 : vector<8x256xf32>
    %210 = vector.broadcast %28 : f32 to vector<8x256xf32>
    %211 = arith.mulf %120, %210 : vector<8x256xf32>
    %212 = vector.broadcast %29 : f32 to vector<8x256xf32>
    %213 = arith.mulf %122, %212 : vector<8x256xf32>
    %214 = arith.addf %211, %213 : vector<8x256xf32>
    %215 = vector.broadcast %30 : f32 to vector<8x256xf32>
    %216 = arith.mulf %124, %215 : vector<8x256xf32>
    %217 = arith.addf %214, %216 : vector<8x256xf32>
    %218 = vector.broadcast %31 : f32 to vector<8x256xf32>
    %219 = arith.mulf %126, %218 : vector<8x256xf32>
    %220 = arith.addf %217, %219 : vector<8x256xf32>
    %221 = vector.broadcast %32 : f32 to vector<8x256xf32>
    %222 = arith.mulf %128, %221 : vector<8x256xf32>
    %223 = arith.addf %220, %222 : vector<8x256xf32>
    %224 = vector.broadcast %33 : f32 to vector<8x256xf32>
    %225 = arith.mulf %130, %224 : vector<8x256xf32>
    %226 = arith.addf %223, %225 : vector<8x256xf32>
    %227 = vector.broadcast %94 : f32 to vector<8x256xf32>
    %228 = arith.addf %226, %227 : vector<8x256xf32>
    %229 = math.tanh %228 : vector<8x256xf32>
    %230 = vector.broadcast %105 : f32 to vector<8x256xf32>
    %231 = arith.mulf %229, %230 : vector<8x256xf32>
    %232 = arith.addf %209, %231 : vector<8x256xf32>
    %233 = vector.broadcast %34 : f32 to vector<8x256xf32>
    %234 = arith.mulf %120, %233 : vector<8x256xf32>
    %235 = vector.broadcast %35 : f32 to vector<8x256xf32>
    %236 = arith.mulf %122, %235 : vector<8x256xf32>
    %237 = arith.addf %234, %236 : vector<8x256xf32>
    %238 = vector.broadcast %36 : f32 to vector<8x256xf32>
    %239 = arith.mulf %124, %238 : vector<8x256xf32>
    %240 = arith.addf %237, %239 : vector<8x256xf32>
    %241 = vector.broadcast %37 : f32 to vector<8x256xf32>
    %242 = arith.mulf %126, %241 : vector<8x256xf32>
    %243 = arith.addf %240, %242 : vector<8x256xf32>
    %244 = vector.broadcast %38 : f32 to vector<8x256xf32>
    %245 = arith.mulf %128, %244 : vector<8x256xf32>
    %246 = arith.addf %243, %245 : vector<8x256xf32>
    %247 = vector.broadcast %39 : f32 to vector<8x256xf32>
    %248 = arith.mulf %130, %247 : vector<8x256xf32>
    %249 = arith.addf %246, %248 : vector<8x256xf32>
    %250 = vector.broadcast %95 : f32 to vector<8x256xf32>
    %251 = arith.addf %249, %250 : vector<8x256xf32>
    %252 = math.tanh %251 : vector<8x256xf32>
    %253 = vector.broadcast %106 : f32 to vector<8x256xf32>
    %254 = arith.mulf %252, %253 : vector<8x256xf32>
    %255 = arith.addf %232, %254 : vector<8x256xf32>
    %256 = vector.broadcast %40 : f32 to vector<8x256xf32>
    %257 = arith.mulf %120, %256 : vector<8x256xf32>
    %258 = vector.broadcast %41 : f32 to vector<8x256xf32>
    %259 = arith.mulf %122, %258 : vector<8x256xf32>
    %260 = arith.addf %257, %259 : vector<8x256xf32>
    %261 = vector.broadcast %42 : f32 to vector<8x256xf32>
    %262 = arith.mulf %124, %261 : vector<8x256xf32>
    %263 = arith.addf %260, %262 : vector<8x256xf32>
    %264 = vector.broadcast %43 : f32 to vector<8x256xf32>
    %265 = arith.mulf %126, %264 : vector<8x256xf32>
    %266 = arith.addf %263, %265 : vector<8x256xf32>
    %267 = vector.broadcast %44 : f32 to vector<8x256xf32>
    %268 = arith.mulf %128, %267 : vector<8x256xf32>
    %269 = arith.addf %266, %268 : vector<8x256xf32>
    %270 = vector.broadcast %45 : f32 to vector<8x256xf32>
    %271 = arith.mulf %130, %270 : vector<8x256xf32>
    %272 = arith.addf %269, %271 : vector<8x256xf32>
    %273 = vector.broadcast %96 : f32 to vector<8x256xf32>
    %274 = arith.addf %272, %273 : vector<8x256xf32>
    %275 = math.tanh %274 : vector<8x256xf32>
    %276 = vector.broadcast %107 : f32 to vector<8x256xf32>
    %277 = arith.mulf %275, %276 : vector<8x256xf32>
    %278 = arith.addf %255, %277 : vector<8x256xf32>
    %279 = vector.broadcast %46 : f32 to vector<8x256xf32>
    %280 = arith.mulf %120, %279 : vector<8x256xf32>
    %281 = vector.broadcast %47 : f32 to vector<8x256xf32>
    %282 = arith.mulf %122, %281 : vector<8x256xf32>
    %283 = arith.addf %280, %282 : vector<8x256xf32>
    %284 = vector.broadcast %48 : f32 to vector<8x256xf32>
    %285 = arith.mulf %124, %284 : vector<8x256xf32>
    %286 = arith.addf %283, %285 : vector<8x256xf32>
    %287 = vector.broadcast %49 : f32 to vector<8x256xf32>
    %288 = arith.mulf %126, %287 : vector<8x256xf32>
    %289 = arith.addf %286, %288 : vector<8x256xf32>
    %290 = vector.broadcast %50 : f32 to vector<8x256xf32>
    %291 = arith.mulf %128, %290 : vector<8x256xf32>
    %292 = arith.addf %289, %291 : vector<8x256xf32>
    %293 = vector.broadcast %51 : f32 to vector<8x256xf32>
    %294 = arith.mulf %130, %293 : vector<8x256xf32>
    %295 = arith.addf %292, %294 : vector<8x256xf32>
    %296 = vector.broadcast %97 : f32 to vector<8x256xf32>
    %297 = arith.addf %295, %296 : vector<8x256xf32>
    %298 = math.tanh %297 : vector<8x256xf32>
    %299 = vector.broadcast %108 : f32 to vector<8x256xf32>
    %300 = arith.mulf %298, %299 : vector<8x256xf32>
    %301 = arith.addf %278, %300 : vector<8x256xf32>
    %302 = vector.broadcast %52 : f32 to vector<8x256xf32>
    %303 = arith.mulf %120, %302 : vector<8x256xf32>
    %304 = vector.broadcast %53 : f32 to vector<8x256xf32>
    %305 = arith.mulf %122, %304 : vector<8x256xf32>
    %306 = arith.addf %303, %305 : vector<8x256xf32>
    %307 = vector.broadcast %54 : f32 to vector<8x256xf32>
    %308 = arith.mulf %124, %307 : vector<8x256xf32>
    %309 = arith.addf %306, %308 : vector<8x256xf32>
    %310 = vector.broadcast %55 : f32 to vector<8x256xf32>
    %311 = arith.mulf %126, %310 : vector<8x256xf32>
    %312 = arith.addf %309, %311 : vector<8x256xf32>
    %313 = vector.broadcast %56 : f32 to vector<8x256xf32>
    %314 = arith.mulf %128, %313 : vector<8x256xf32>
    %315 = arith.addf %312, %314 : vector<8x256xf32>
    %316 = vector.broadcast %57 : f32 to vector<8x256xf32>
    %317 = arith.mulf %130, %316 : vector<8x256xf32>
    %318 = arith.addf %315, %317 : vector<8x256xf32>
    %319 = vector.broadcast %98 : f32 to vector<8x256xf32>
    %320 = arith.addf %318, %319 : vector<8x256xf32>
    %321 = math.tanh %320 : vector<8x256xf32>
    %322 = vector.broadcast %109 : f32 to vector<8x256xf32>
    %323 = arith.mulf %321, %322 : vector<8x256xf32>
    %324 = arith.addf %301, %323 : vector<8x256xf32>
    %325 = vector.broadcast %58 : f32 to vector<8x256xf32>
    %326 = arith.mulf %120, %325 : vector<8x256xf32>
    %327 = vector.broadcast %59 : f32 to vector<8x256xf32>
    %328 = arith.mulf %122, %327 : vector<8x256xf32>
    %329 = arith.addf %326, %328 : vector<8x256xf32>
    %330 = vector.broadcast %60 : f32 to vector<8x256xf32>
    %331 = arith.mulf %124, %330 : vector<8x256xf32>
    %332 = arith.addf %329, %331 : vector<8x256xf32>
    %333 = vector.broadcast %61 : f32 to vector<8x256xf32>
    %334 = arith.mulf %126, %333 : vector<8x256xf32>
    %335 = arith.addf %332, %334 : vector<8x256xf32>
    %336 = vector.broadcast %62 : f32 to vector<8x256xf32>
    %337 = arith.mulf %128, %336 : vector<8x256xf32>
    %338 = arith.addf %335, %337 : vector<8x256xf32>
    %339 = vector.broadcast %63 : f32 to vector<8x256xf32>
    %340 = arith.mulf %130, %339 : vector<8x256xf32>
    %341 = arith.addf %338, %340 : vector<8x256xf32>
    %342 = vector.broadcast %99 : f32 to vector<8x256xf32>
    %343 = arith.addf %341, %342 : vector<8x256xf32>
    %344 = math.tanh %343 : vector<8x256xf32>
    %345 = vector.broadcast %110 : f32 to vector<8x256xf32>
    %346 = arith.mulf %344, %345 : vector<8x256xf32>
    %347 = arith.addf %324, %346 : vector<8x256xf32>
    %348 = vector.broadcast %64 : f32 to vector<8x256xf32>
    %349 = arith.mulf %120, %348 : vector<8x256xf32>
    %350 = vector.broadcast %65 : f32 to vector<8x256xf32>
    %351 = arith.mulf %122, %350 : vector<8x256xf32>
    %352 = arith.addf %349, %351 : vector<8x256xf32>
    %353 = vector.broadcast %66 : f32 to vector<8x256xf32>
    %354 = arith.mulf %124, %353 : vector<8x256xf32>
    %355 = arith.addf %352, %354 : vector<8x256xf32>
    %356 = vector.broadcast %67 : f32 to vector<8x256xf32>
    %357 = arith.mulf %126, %356 : vector<8x256xf32>
    %358 = arith.addf %355, %357 : vector<8x256xf32>
    %359 = vector.broadcast %68 : f32 to vector<8x256xf32>
    %360 = arith.mulf %128, %359 : vector<8x256xf32>
    %361 = arith.addf %358, %360 : vector<8x256xf32>
    %362 = vector.broadcast %69 : f32 to vector<8x256xf32>
    %363 = arith.mulf %130, %362 : vector<8x256xf32>
    %364 = arith.addf %361, %363 : vector<8x256xf32>
    %365 = vector.broadcast %100 : f32 to vector<8x256xf32>
    %366 = arith.addf %364, %365 : vector<8x256xf32>
    %367 = math.tanh %366 : vector<8x256xf32>
    %368 = vector.broadcast %111 : f32 to vector<8x256xf32>
    %369 = arith.mulf %367, %368 : vector<8x256xf32>
    %370 = arith.addf %347, %369 : vector<8x256xf32>
    %371 = vector.broadcast %70 : f32 to vector<8x256xf32>
    %372 = arith.mulf %120, %371 : vector<8x256xf32>
    %373 = vector.broadcast %71 : f32 to vector<8x256xf32>
    %374 = arith.mulf %122, %373 : vector<8x256xf32>
    %375 = arith.addf %372, %374 : vector<8x256xf32>
    %376 = vector.broadcast %72 : f32 to vector<8x256xf32>
    %377 = arith.mulf %124, %376 : vector<8x256xf32>
    %378 = arith.addf %375, %377 : vector<8x256xf32>
    %379 = vector.broadcast %73 : f32 to vector<8x256xf32>
    %380 = arith.mulf %126, %379 : vector<8x256xf32>
    %381 = arith.addf %378, %380 : vector<8x256xf32>
    %382 = vector.broadcast %74 : f32 to vector<8x256xf32>
    %383 = arith.mulf %128, %382 : vector<8x256xf32>
    %384 = arith.addf %381, %383 : vector<8x256xf32>
    %385 = vector.broadcast %75 : f32 to vector<8x256xf32>
    %386 = arith.mulf %130, %385 : vector<8x256xf32>
    %387 = arith.addf %384, %386 : vector<8x256xf32>
    %388 = vector.broadcast %101 : f32 to vector<8x256xf32>
    %389 = arith.addf %387, %388 : vector<8x256xf32>
    %390 = math.tanh %389 : vector<8x256xf32>
    %391 = vector.broadcast %112 : f32 to vector<8x256xf32>
    %392 = arith.mulf %390, %391 : vector<8x256xf32>
    %393 = arith.addf %370, %392 : vector<8x256xf32>
    %394 = vector.broadcast %76 : f32 to vector<8x256xf32>
    %395 = arith.mulf %120, %394 : vector<8x256xf32>
    %396 = vector.broadcast %77 : f32 to vector<8x256xf32>
    %397 = arith.mulf %122, %396 : vector<8x256xf32>
    %398 = arith.addf %395, %397 : vector<8x256xf32>
    %399 = vector.broadcast %78 : f32 to vector<8x256xf32>
    %400 = arith.mulf %124, %399 : vector<8x256xf32>
    %401 = arith.addf %398, %400 : vector<8x256xf32>
    %402 = vector.broadcast %79 : f32 to vector<8x256xf32>
    %403 = arith.mulf %126, %402 : vector<8x256xf32>
    %404 = arith.addf %401, %403 : vector<8x256xf32>
    %405 = vector.broadcast %80 : f32 to vector<8x256xf32>
    %406 = arith.mulf %128, %405 : vector<8x256xf32>
    %407 = arith.addf %404, %406 : vector<8x256xf32>
    %408 = vector.broadcast %81 : f32 to vector<8x256xf32>
    %409 = arith.mulf %130, %408 : vector<8x256xf32>
    %410 = arith.addf %407, %409 : vector<8x256xf32>
    %411 = vector.broadcast %102 : f32 to vector<8x256xf32>
    %412 = arith.addf %410, %411 : vector<8x256xf32>
    %413 = math.tanh %412 : vector<8x256xf32>
    %414 = vector.broadcast %113 : f32 to vector<8x256xf32>
    %415 = arith.mulf %413, %414 : vector<8x256xf32>
    %416 = arith.addf %393, %415 : vector<8x256xf32>
    %417 = vector.broadcast %82 : f32 to vector<8x256xf32>
    %418 = arith.mulf %120, %417 : vector<8x256xf32>
    %419 = vector.broadcast %83 : f32 to vector<8x256xf32>
    %420 = arith.mulf %122, %419 : vector<8x256xf32>
    %421 = arith.addf %418, %420 : vector<8x256xf32>
    %422 = vector.broadcast %84 : f32 to vector<8x256xf32>
    %423 = arith.mulf %124, %422 : vector<8x256xf32>
    %424 = arith.addf %421, %423 : vector<8x256xf32>
    %425 = vector.broadcast %85 : f32 to vector<8x256xf32>
    %426 = arith.mulf %126, %425 : vector<8x256xf32>
    %427 = arith.addf %424, %426 : vector<8x256xf32>
    %428 = vector.broadcast %86 : f32 to vector<8x256xf32>
    %429 = arith.mulf %128, %428 : vector<8x256xf32>
    %430 = arith.addf %427, %429 : vector<8x256xf32>
    %431 = vector.broadcast %87 : f32 to vector<8x256xf32>
    %432 = arith.mulf %130, %431 : vector<8x256xf32>
    %433 = arith.addf %430, %432 : vector<8x256xf32>
    %434 = vector.broadcast %103 : f32 to vector<8x256xf32>
    %435 = arith.addf %433, %434 : vector<8x256xf32>
    %436 = math.tanh %435 : vector<8x256xf32>
    %437 = vector.broadcast %114 : f32 to vector<8x256xf32>
    %438 = arith.mulf %436, %437 : vector<8x256xf32>
    %439 = arith.addf %416, %438 : vector<8x256xf32>
    %440 = vector.broadcast %88 : f32 to vector<8x256xf32>
    %441 = arith.mulf %120, %440 : vector<8x256xf32>
    %442 = vector.broadcast %89 : f32 to vector<8x256xf32>
    %443 = arith.mulf %122, %442 : vector<8x256xf32>
    %444 = arith.addf %441, %443 : vector<8x256xf32>
    %445 = vector.broadcast %90 : f32 to vector<8x256xf32>
    %446 = arith.mulf %124, %445 : vector<8x256xf32>
    %447 = arith.addf %444, %446 : vector<8x256xf32>
    %448 = vector.broadcast %91 : f32 to vector<8x256xf32>
    %449 = arith.mulf %126, %448 : vector<8x256xf32>
    %450 = arith.addf %447, %449 : vector<8x256xf32>
    %451 = vector.broadcast %92 : f32 to vector<8x256xf32>
    %452 = arith.mulf %128, %451 : vector<8x256xf32>
    %453 = arith.addf %450, %452 : vector<8x256xf32>
    %454 = vector.broadcast %93 : f32 to vector<8x256xf32>
    %455 = arith.mulf %130, %454 : vector<8x256xf32>
    %456 = arith.addf %453, %455 : vector<8x256xf32>
    %457 = vector.broadcast %104 : f32 to vector<8x256xf32>
    %458 = arith.addf %456, %457 : vector<8x256xf32>
    %459 = math.tanh %458 : vector<8x256xf32>
    %460 = vector.broadcast %115 : f32 to vector<8x256xf32>
    %461 = arith.mulf %459, %460 : vector<8x256xf32>
    %462 = arith.addf %439, %461 : vector<8x256xf32>
    %c0_18 = arith.constant 0 : index
    %c0_19 = arith.constant 0 : index
    %463 = vector.load %arg3[%c0_18, %c0_19] : memref<8x256xf32, #tpu.memory_space<vmem>>, vector<8x256xf32>
    tpu.vector_store %arg3[%c0_18, %c0_19], %462 {strides = array<i32>} : memref<8x256xf32, #tpu.memory_space<vmem>>, vector<8x256xf32>,
    return
  }
  func.func @transform_0(%arg0: i32) -> i32 {
    %c0_i32 = arith.constant 0 : i32
    %c0_i32_0 = arith.constant 0 : i32
    return %c0_i32 : i32
  }
  func.func @transform_1(%arg0: i32) -> (i32, i32, i32) {
    %c0_i32 = arith.constant 0 : i32
    %c0_i32_0 = arith.constant 0 : i32
    %c0_i32_1 = arith.constant 0 : i32
    return %c0_i32, %c0_i32_0, %arg0 : i32, i32, i32
  }
  func.func @transform_2(%arg0: i32) -> (i32, i32) {
    %c0_i32 = arith.constant 0 : i32
    %c0_i32_0 = arith.constant 0 : i32
    return %c0_i32, %arg0 : i32, i32
  }
}

</mosaic_0001>

<llo_original>
// kernel: iawd_forward.2
$region0: #{iawd_forward.2}
  #allocation0 [shape = 'u32[]', space=smem, size = 0x4, offset = 0x4, fixed_abs, tag = 'smem constant byte address 0x4 - core index']
  #allocation1 [shape = 'u32[72,128]{1,0:T(1,128)}', space=vmem, size = 0x9000, scoped, tag = 'internal scratch']
  %s0 = inlined_call_operand.vmem [shape: f32[6], index: 0, kind: input, shape index: {}]
  %s1 = inlined_call_operand.vmem [shape: f32[6,8,256], index: 1, kind: input, shape index: {}]
  %s2 = inlined_call_operand.vmem [shape: f32[1,2,6,8,128], index: 2, kind: output, shape index: {}]
  %s3 = sld [smem:[#allocation0]]
  $region26: #{iawd_forward.2} parent=0
    _
  %s5 = ssub.s32 1, %s3
  %s6 = scalar_select 0, %s5, %s3
  $region1: #{iawd_forward.2} parent=0
    #allocation2 [shape = 'u8[512]{0}', space=smem, size = 0x200, scoped, tag = 'input window, operand 0, single buffered']
    #allocation3 [shape = 's32[1]{0}', space=sflag, size = 0x4, scoped, tag = 'scoped memory for iawd_forward.2']
    %7 = vsyncpa [#allocation3], 0
    // Predicated region
    $region2: #{iawd_forward.2} parent=1 // pred_check
      _
    $region3: #{iawd_forward.2} parent=1 // pred_check_branch
      %9 = sbr.rel (0) target = $region5
    $region4: #{iawd_forward.2} parent=1 // pred_region
      %11 = vsyncadd [#allocation3], 0
      %s13 = sshll.u32 %s0, 4
      %s14 = int_to_ptr.vmem [resolvable:$true] %s13
      %16 = dma.vmem_to_smem %s14, 16, [#allocation2], [#allocation3]
    $region5: #{iawd_forward.2} parent=1 // pred_fallthru
      _
    // Predicated region
    $region6: #{iawd_forward.2} parent=1 // pred_check
      _
    $region7: #{iawd_forward.2} parent=1 // pred_check_branch
      %18 = sbr.rel (0) target = $region9
    $region8: #{iawd_forward.2} parent=1 // pred_region
      %s19 = sadd.s32 0, 0
      %s20 = smul.u32 2, %s19
      %p21 = scmp.lt.s32.totalorder %s20, 1
      %s22 = scalar_select %p21, %s20, 1
      %s23 = smul.addr %s22, 8
      %s24 = scalar_lea.vmem %s1, %s23
      %s25 = sadd.s32 0, 0
      %s26 = smul.u32 2, %s25
    $region9: #{iawd_forward.2} parent=1 // pred_fallthru
      _
    // Predicated region
    $region10: #{iawd_forward.2} parent=1 // pred_check
      _
    $region11: #{iawd_forward.2} parent=1 // pred_check_branch
      %28 = sbr.rel (0) target = $region13
    $region12: #{iawd_forward.2} parent=1 // pred_region
      %30 = dma.done [#allocation3], 16
    $region13: #{iawd_forward.2} parent=1 // pred_fallthru
      _
    %31 = sfence
    %s32 = sadd.s32 0, 0
    %s33 = smul.u32 2, %s32
    %p34 = scmp.lt.s32.totalorder %s33, 1
    %s35 = scalar_select %p34, %s33, 1
    %s36 = smul.addr %s35, 8
    %s37 = scalar_lea.vmem %s1, %s36
    %s38 = sadd.s32 0, 0
    %s39 = smul.u32 2, %s38
    %p40 = scmp.lt.s32.totalorder %s39, 1
    %s41 = scalar_select %p40, %s39, 1
    %s42 = smul.addr %s41, 8
    %s43 = scalar_lea.vmem %s1, %s42
    %s44 = sadd.s32 0, 0
    %s45 = smul.u32 2, %s44
    %p46 = scmp.eq.s32.totalorder 0, 0
    // Predicated region
    $region14: #{iawd_forward.2} parent=1 // pred_check
      %p47 = pneg %p46
    $region15: #{iawd_forward.2} parent=1 // pred_check_branch
      %49 = sbr.rel (%p47) target = $region17
    $region16: #{iawd_forward.2} parent=1 // pred_region
      %50 = vst [vmem:[%s2] sm:$0xff] 0.0
      %51 = vst [vmem:[%s2 + $0x8] sm:$0xff] 0.0
      %52 = vst [vmem:[%s2 + $0x10] sm:$0xff] 0.0
      %53 = vst [vmem:[%s2 + $0x18] sm:$0xff] 0.0
      %54 = vst [vmem:[%s2 + $0x20] sm:$0xff] 0.0
      %55 = vst [vmem:[%s2 + $0x28] sm:$0xff] 0.0
      %56 = vst [vmem:[%s2 + $0x30] sm:$0xff] 0.0
      %57 = vst [vmem:[%s2 + $0x38] sm:$0xff] 0.0
      %58 = vst [vmem:[%s2 + $0x40] sm:$0xff] 0.0
      %59 = vst [vmem:[%s2 + $0x48] sm:$0xff] 0.0
      %60 = vst [vmem:[%s2 + $0x50] sm:$0xff] 0.0
      %61 = vst [vmem:[%s2 + $0x58] sm:$0xff] 0.0
    $region17: #{iawd_forward.2} parent=1 // pred_fallthru
      _
    %s62 = sld [smem:[#allocation2]]
    %s63 = sld [smem:[#allocation2 + $0x1]]
    %s64 = sld [smem:[#allocation2 + $0x2]]
    %s65 = sld [smem:[#allocation2 + $0x3]]
    %s66 = sld [smem:[#allocation2 + $0x4]]
    %s67 = sld [smem:[#allocation2 + $0x5]]
    %v68 = vld [vmem:[%s2] sm:$0xff]
    %s69 = scalar_lea.vmem %s2, 8
    %v70 = vld [vmem:[%s69] sm:$0xff]
    %s71 = scalar_lea.vmem %s2, 16
    %v72 = vld [vmem:[%s71] sm:$0xff]
    %s73 = scalar_lea.vmem %s2, 24
    %v74 = vld [vmem:[%s73] sm:$0xff]
    %s75 = scalar_lea.vmem %s2, 32
    %v76 = vld [vmem:[%s75] sm:$0xff]
    %s77 = scalar_lea.vmem %s2, 40
    %v78 = vld [vmem:[%s77] sm:$0xff]
    %s79 = scalar_lea.vmem %s2, 48
    %v80 = vld [vmem:[%s79] sm:$0xff]
    %s81 = scalar_lea.vmem %s2, 56
    %v82 = vld [vmem:[%s81] sm:$0xff]
    %s83 = scalar_lea.vmem %s2, 64
    %v84 = vld [vmem:[%s83] sm:$0xff]
    %s85 = scalar_lea.vmem %s2, 72
    %v86 = vld [vmem:[%s85] sm:$0xff]
    %s87 = scalar_lea.vmem %s2, 80
    %v88 = vld [vmem:[%s87] sm:$0xff]
    %s89 = scalar_lea.vmem %s2, 88
    %v90 = vld [vmem:[%s89] sm:$0xff]
    %v91 = vld [vmem:[%s43] sm:$0xff]
    %v92 = vstv %s62
    %v93 = vsub.f32 %v91, %v92
    %v94 = vadd.f32 %v68, %v93
    %v95 = vmul.f32 %v93, %v93
    %v96 = vadd.f32 %v80, %v95
    %s97 = scalar_lea.vmem %s43, 16
    %v98 = vld [vmem:[%s97] sm:$0xff]
    %v99 = vstv %s63
    %v100 = vsub.f32 %v98, %v99
    %v101 = vadd.f32 %v70, %v100
    %v102 = vmul.f32 %v100, %v100
    %v103 = vadd.f32 %v82, %v102
    %s104 = scalar_lea.vmem %s43, 32
    %v105 = vld [vmem:[%s104] sm:$0xff]
    %v106 = vstv %s64
    %v107 = vsub.f32 %v105, %v106
    %v108 = vadd.f32 %v72, %v107
    %v109 = vmul.f32 %v107, %v107
    %v110 = vadd.f32 %v84, %v109
    %s111 = scalar_lea.vmem %s43, 48
    %v112 = vld [vmem:[%s111] sm:$0xff]
    %v113 = vstv %s65
    %v114 = vsub.f32 %v112, %v113
    %v115 = vadd.f32 %v74, %v114
    %v116 = vmul.f32 %v114, %v114
    %v117 = vadd.f32 %v86, %v116
    %s118 = scalar_lea.vmem %s43, 64
    %v119 = vld [vmem:[%s118] sm:$0xff]
    %v120 = vstv %s66
    %v121 = vsub.f32 %v119, %v120
    %v122 = vadd.f32 %v76, %v121
    %v123 = vmul.f32 %v121, %v121
    %v124 = vadd.f32 %v88, %v123
    %s125 = scalar_lea.vmem %s43, 80
    %v126 = vld [vmem:[%s125] sm:$0xff]
    %v127 = vstv %s67
    %v128 = vsub.f32 %v126, %v127
    %v129 = vadd.f32 %v78, %v128
    %v130 = vmul.f32 %v128, %v128
    %v131 = vadd.f32 %v90, %v130
    %v132 = vld [vmem:[%s43 + $0x8] sm:$0xff]
    %v133 = vsub.f32 %v132, %v92
    %v134 = vadd.f32 %v94, %v133
    %v135 = vmul.f32 %v133, %v133
    %v136 = vadd.f32 %v96, %v135
    %v137 = vld [vmem:[%s97 + $0x8] sm:$0xff]
    %v138 = vsub.f32 %v137, %v99
    %v139 = vadd.f32 %v101, %v138
    %v140 = vmul.f32 %v138, %v138
    %v141 = vadd.f32 %v103, %v140
    %v142 = vld [vmem:[%s104 + $0x8] sm:$0xff]
    %v143 = vsub.f32 %v142, %v106
    %v144 = vadd.f32 %v108, %v143
    %v145 = vmul.f32 %v143, %v143
    %v146 = vadd.f32 %v110, %v145
    %v147 = vld [vmem:[%s111 + $0x8] sm:$0xff]
    %v148 = vsub.f32 %v147, %v113
    %v149 = vadd.f32 %v115, %v148
    %v150 = vmul.f32 %v148, %v148
    %v151 = vadd.f32 %v117, %v150
    %v152 = vld [vmem:[%s118 + $0x8] sm:$0xff]
    %v153 = vsub.f32 %v152, %v120
    %v154 = vadd.f32 %v122, %v153
    %v155 = vmul.f32 %v153, %v153
    %v156 = vadd.f32 %v124, %v155
    %v157 = vld [vmem:[%s125 + $0x8] sm:$0xff]
    %v158 = vsub.f32 %v157, %v127
    %v159 = vadd.f32 %v129, %v158
    %v160 = vmul.f32 %v158, %v158
    %v161 = vadd.f32 %v131, %v160
    %162 = vst [vmem:[%s2] sm:$0xff] %v134
    %163 = vst [vmem:[%s79] sm:$0xff] %v136
    %164 = vst [vmem:[%s69] sm:$0xff] %v139
    %165 = vst [vmem:[%s81] sm:$0xff] %v141
    %166 = vst [vmem:[%s71] sm:$0xff] %v144
    %167 = vst [vmem:[%s83] sm:$0xff] %v146
    %168 = vst [vmem:[%s73] sm:$0xff] %v149
    %169 = vst [vmem:[%s85] sm:$0xff] %v151
    %170 = vst [vmem:[%s75] sm:$0xff] %v154
    %171 = vst [vmem:[%s87] sm:$0xff] %v156
    %172 = vst [vmem:[%s77] sm:$0xff] %v159
    %173 = vst [vmem:[%s89] sm:$0xff] %v161
    // Predicated region
    $region18: #{iawd_forward.2} parent=1 // pred_check
      _
    $region19: #{iawd_forward.2} parent=1 // pred_check_branch
      %175 = sbr.rel (0) target = $region21
    $region20: #{iawd_forward.2} parent=1 // pred_region
      _
    $region21: #{iawd_forward.2} parent=1 // pred_fallthru
      _
    // Predicated region
    $region22: #{iawd_forward.2} parent=1 // pred_check
      _
    $region23: #{iawd_forward.2} parent=1 // pred_check_branch
      %177 = sbr.rel (0) target = $region25
    $region24: #{iawd_forward.2} parent=1 // pred_region
      _
    $region25: #{iawd_forward.2} parent=1 // pred_fallthru
      _
    %178 = vsyncpa [#allocation3], 1

// kernel: iawd_forward.3
$region0: #{iawd_forward.3}
  #allocation0 [shape = 'u32[]', space=smem, size = 0x4, offset = 0x4, fixed_abs, tag = 'smem constant byte address 0x4 - core index']
  #allocation1 [shape = 'u32[72,128]{1,0:T(1,128)}', space=vmem, size = 0x9000, scoped, tag = 'internal scratch']
  %s0 = inlined_call_operand.vmem [shape: f32[118], index: 0, kind: input, shape index: {}]
  %s1 = inlined_call_operand.vmem [shape: f32[6,8,256], index: 1, kind: input, shape index: {}]
  %s2 = inlined_call_operand.vmem [shape: f32[8,256], index: 2, kind: output, shape index: {}]
  %s3 = sld [smem:[#allocation0]]
  $region22: #{iawd_forward.3} parent=0
    _
  %s5 = ssub.s32 1, %s3
  %s6 = scalar_select 0, %s5, %s3
  $region1: #{iawd_forward.3} parent=0
    #allocation2 [shape = 'u8[512]{0}', space=smem, size = 0x200, scoped, tag = 'input window, operand 0, single buffered']
    #allocation3 [shape = 's32[1]{0}', space=sflag, size = 0x4, scoped, tag = 'scoped memory for iawd_forward.3']
    %7 = vsyncpa [#allocation3], 0
    // Predicated region
    $region2: #{iawd_forward.3} parent=1 // pred_check
      _
    $region3: #{iawd_forward.3} parent=1 // pred_check_branch
      %9 = sbr.rel (0) target = $region5
    $region4: #{iawd_forward.3} parent=1 // pred_region
      %11 = vsyncadd [#allocation3], 0
      %s13 = sshll.u32 %s0, 4
      %s14 = int_to_ptr.vmem [resolvable:$true] %s13
      %16 = dma.vmem_to_smem %s14, 16, [#allocation2], [#allocation3]
    $region5: #{iawd_forward.3} parent=1 // pred_fallthru
      _
    // Predicated region
    $region6: #{iawd_forward.3} parent=1 // pred_check
      _
    $region7: #{iawd_forward.3} parent=1 // pred_check_branch
      %18 = sbr.rel (0) target = $region9
    $region8: #{iawd_forward.3} parent=1 // pred_region
      _
    $region9: #{iawd_forward.3} parent=1 // pred_fallthru
      _
    // Predicated region
    $region10: #{iawd_forward.3} parent=1 // pred_check
      _
    $region11: #{iawd_forward.3} parent=1 // pred_check_branch
      %20 = sbr.rel (0) target = $region13
    $region12: #{iawd_forward.3} parent=1 // pred_region
      %22 = dma.done [#allocation3], 16
    $region13: #{iawd_forward.3} parent=1 // pred_fallthru
      _
    %23 = sfence
    %s24 = sld [smem:[#allocation2]]
    %s25 = sld [smem:[#allocation2 + $0x1]]
    %s26 = sld [smem:[#allocation2 + $0x2]]
    %s27 = sld [smem:[#allocation2 + $0x3]]
    %s28 = sld [smem:[#allocation2 + $0x4]]
    %s29 = sld [smem:[#allocation2 + $0x5]]
    %s30 = sld [smem:[#allocation2 + $0x6]]
    %s31 = sld [smem:[#allocation2 + $0x7]]
    %s32 = sld [smem:[#allocation2 + $0x8]]
    %s33 = sld [smem:[#allocation2 + $0x9]]
    %s34 = sld [smem:[#allocation2 + $0xa]]
    %s35 = sld [smem:[#allocation2 + $0xb]]
    %s36 = sld [smem:[#allocation2 + $0xc]]
    %s37 = sld [smem:[#allocation2 + $0xd]]
    %s38 = sld [smem:[#allocation2 + $0xe]]
    %s39 = sld [smem:[#allocation2 + $0xf]]
    %s40 = sld [smem:[#allocation2 + $0x10]]
    %s41 = sld [smem:[#allocation2 + $0x11]]
    %s42 = sld [smem:[#allocation2 + $0x12]]
    %s43 = sld [smem:[#allocation2 + $0x13]]
    %s44 = sld [smem:[#allocation2 + $0x14]]
    %s45 = sld [smem:[#allocation2 + $0x15]]
    %s46 = sld [smem:[#allocation2 + $0x16]]
    %s47 = sld [smem:[#allocation2 + $0x17]]
    %s48 = sld [smem:[#allocation2 + $0x18]]
    %s49 = sld [smem:[#allocation2 + $0x19]]
    %s50 = sld [smem:[#allocation2 + $0x1a]]
    %s51 = sld [smem:[#allocation2 + $0x1b]]
    %s52 = sld [smem:[#allocation2 + $0x1d]]
    %s53 = sld [smem:[#allocation2 + $0x1e]]
    %s54 = sld [smem:[#allocation2 + $0x1f]]
    %s55 = sld [smem:[#allocation2 + $0x20]]
    %s56 = sld [smem:[#allocation2 + $0x21]]
    %s57 = sld [smem:[#allocation2 + $0x22]]
    %s58 = sld [smem:[#allocation2 + $0x23]]
    %s59 = sld [smem:[#allocation2 + $0x24]]
    %s60 = sld [smem:[#allocation2 + $0x25]]
    %s61 = sld [smem:[#allocation2 + $0x26]]
    %s62 = sld [smem:[#allocation2 + $0x27]]
    %s63 = sld [smem:[#allocation2 + $0x28]]
    %s64 = sld [smem:[#allocation2 + $0x29]]
    %s65 = sld [smem:[#allocation2 + $0x2a]]
    %s66 = sld [smem:[#allocation2 + $0x2b]]
    %s67 = sld [smem:[#allocation2 + $0x2c]]
    %s68 = sld [smem:[#allocation2 + $0x2d]]
    %s69 = sld [smem:[#allocation2 + $0x2e]]
    %s70 = sld [smem:[#allocation2 + $0x2f]]
    %s71 = sld [smem:[#allocation2 + $0x30]]
    %s72 = sld [smem:[#allocation2 + $0x31]]
    %s73 = sld [smem:[#allocation2 + $0x32]]
    %s74 = sld [smem:[#allocation2 + $0x33]]
    %s75 = sld [smem:[#allocation2 + $0x34]]
    %s76 = sld [smem:[#allocation2 + $0x35]]
    %s77 = sld [smem:[#allocation2 + $0x36]]
    %s78 = sld [smem:[#allocation2 + $0x37]]
    %s79 = sld [smem:[#allocation2 + $0x38]]
    %s80 = sld [smem:[#allocation2 + $0x39]]
    %s81 = sld [smem:[#allocation2 + $0x3a]]
    %s82 = sld [smem:[#allocation2 + $0x3b]]
    %s83 = sld [smem:[#allocation2 + $0x3c]]
    %s84 = sld [smem:[#allocation2 + $0x3d]]
    %s85 = sld [smem:[#allocation2 + $0x3e]]
    %s86 = sld [smem:[#allocation2 + $0x3f]]
    %s87 = sld [smem:[#allocation2 + $0x40]]
    %s88 = sld [smem:[#allocation2 + $0x41]]
    %s89 = sld [smem:[#allocation2 + $0x42]]
    %s90 = sld [smem:[#allocation2 + $0x43]]
    %s91 = sld [smem:[#allocation2 + $0x44]]
    %s92 = sld [smem:[#allocation2 + $0x45]]
    %s93 = sld [smem:[#allocation2 + $0x46]]
    %s94 = sld [smem:[#allocation2 + $0x47]]
    %s95 = sld [smem:[#allocation2 + $0x48]]
    %s96 = sld [smem:[#allocation2 + $0x49]]
    %s97 = sld [smem:[#allocation2 + $0x4a]]
    %s98 = sld [smem:[#allocation2 + $0x4b]]
    %s99 = sld [smem:[#allocation2 + $0x4c]]
    %s100 = sld [smem:[#allocation2 + $0x4d]]
    %s101 = sld [smem:[#allocation2 + $0x4e]]
    %s102 = sld [smem:[#allocation2 + $0x4f]]
    %s103 = sld [smem:[#allocation2 + $0x50]]
    %s104 = sld [smem:[#allocation2 + $0x51]]
    %s105 = sld [smem:[#allocation2 + $0x52]]
    %s106 = sld [smem:[#allocation2 + $0x53]]
    %s107 = sld [smem:[#allocation2 + $0x54]]
    %s108 = sld [smem:[#allocation2 + $0x55]]
    %s109 = sld [smem:[#allocation2 + $0x56]]
    %s110 = sld [smem:[#allocation2 + $0x57]]
    %s111 = sld [smem:[#allocation2 + $0x58]]
    %s112 = sld [smem:[#allocation2 + $0x59]]
    %s113 = sld [smem:[#allocation2 + $0x5a]]
    %s114 = sld [smem:[#allocation2 + $0x5b]]
    %s115 = sld [smem:[#allocation2 + $0x5c]]
    %s116 = sld [smem:[#allocation2 + $0x5d]]
    %s117 = sld [smem:[#allocation2 + $0x5e]]
    %s118 = sld [smem:[#allocation2 + $0x5f]]
    %s119 = sld [smem:[#allocation2 + $0x60]]
    %s120 = sld [smem:[#allocation2 + $0x61]]
    %s121 = sld [smem:[#allocation2 + $0x62]]
    %s122 = sld [smem:[#allocation2 + $0x63]]
    %s123 = sld [smem:[#allocation2 + $0x64]]
    %s124 = sld [smem:[#allocation2 + $0x65]]
    %s125 = sld [smem:[#allocation2 + $0x66]]
    %s126 = sld [smem:[#allocation2 + $0x67]]
    %s127 = sld [smem:[#allocation2 + $0x68]]
    %s128 = sld [smem:[#allocation2 + $0x69]]
    %s129 = sld [smem:[#allocation2 + $0x6a]]
    %s130 = sld [smem:[#allocation2 + $0x6b]]
    %s131 = sld [smem:[#allocation2 + $0x6c]]
    %s132 = sld [smem:[#allocation2 + $0x6d]]
    %s133 = sld [smem:[#allocation2 + $0x6e]]
    %s134 = sld [smem:[#allocation2 + $0x6f]]
    %s135 = sld [smem:[#allocation2 + $0x70]]
    %s136 = sld [smem:[#allocation2 + $0x71]]
    %s137 = sld [smem:[#allocation2 + $0x72]]
    %s138 = sld [smem:[#allocation2 + $0x73]]
    %s139 = sld [smem:[#allocation2 + $0x74]]
    %s140 = sld [smem:[#allocation2 + $0x1c]]
    %s141 = sld [smem:[#allocation2 + $0x75]]
    %s142 = sadd.f32 %s140, %s141
    %v143 = vld [vmem:[%s1] sm:$0xff]
    %v144 = vld [vmem:[%s1 + $0x8] sm:$0xff]
    %s145 = scalar_lea.vmem %s1, 16
    %v146 = vld [vmem:[%s145] sm:$0xff]
    %v147 = vld [vmem:[%s145 + $0x8] sm:$0xff]
    %s148 = scalar_lea.vmem %s1, 32
    %v149 = vld [vmem:[%s148] sm:$0xff]
    %v150 = vld [vmem:[%s148 + $0x8] sm:$0xff]
    %s151 = scalar_lea.vmem %s1, 48
    %v152 = vld [vmem:[%s151] sm:$0xff]
    %v153 = vld [vmem:[%s151 + $0x8] sm:$0xff]
    %s154 = scalar_lea.vmem %s1, 64
    %v155 = vld [vmem:[%s154] sm:$0xff]
    %v156 = vld [vmem:[%s154 + $0x8] sm:$0xff]
    %s157 = scalar_lea.vmem %s1, 80
    %v158 = vld [vmem:[%s157] sm:$0xff]
    %v159 = vld [vmem:[%s157 + $0x8] sm:$0xff]
    %v160 = vstv %s24
    %v161 = vmul.f32 %v143, %v160
    %v162 = vmul.f32 %v144, %v160
    %v163 = vstv %s25
    %v164 = vmul.f32 %v146, %v163
    %v165 = vmul.f32 %v147, %v163
    %v166 = vadd.f32 %v161, %v164
    %v167 = vadd.f32 %v162, %v165
    %v168 = vstv %s26
    %v169 = vmul.f32 %v149, %v168
    %v170 = vmul.f32 %v150, %v168
    %v171 = vadd.f32 %v166, %v169
    %v172 = vadd.f32 %v167, %v170
    %v173 = vstv %s27
    %v174 = vmul.f32 %v152, %v173
    %v175 = vmul.f32 %v153, %v173
    %v176 = vadd.f32 %v171, %v174
    %v177 = vadd.f32 %v172, %v175
    %v178 = vstv %s28
    %v179 = vmul.f32 %v155, %v178
    %v180 = vmul.f32 %v156, %v178
    %v181 = vadd.f32 %v176, %v179
    %v182 = vadd.f32 %v177, %v180
    %v183 = vstv %s29
    %v184 = vmul.f32 %v158, %v183
    %v185 = vmul.f32 %v159, %v183
    %v186 = vadd.f32 %v181, %v184
    %v187 = vadd.f32 %v182, %v185
    %v188 = vstv %s36
    %v189 = vadd.f32 %v186, %v188
    %v190 = vadd.f32 %v187, %v188
    %v191 = vtanh.pop %v189
    %v192 = vtanh.pop %v190
    %v193 = vstv %s30
    %v194 = vmul.f32 %v143, %v193
    %v195 = vmul.f32 %v144, %v193
    %v196 = vstv %s31
    %v197 = vmul.f32 %v146, %v196
    %v198 = vmul.f32 %v147, %v196
    %v199 = vadd.f32 %v194, %v197
    %v200 = vadd.f32 %v195, %v198
    %v201 = vstv %s32
    %v202 = vmul.f32 %v149, %v201
    %v203 = vmul.f32 %v150, %v201
    %v204 = vadd.f32 %v199, %v202
    %v205 = vadd.f32 %v200, %v203
    %v206 = vstv %s33
    %v207 = vmul.f32 %v152, %v206
    %v208 = vmul.f32 %v153, %v206
    %v209 = vadd.f32 %v204, %v207
    %v210 = vadd.f32 %v205, %v208
    %v211 = vstv %s34
    %v212 = vmul.f32 %v155, %v211
    %v213 = vmul.f32 %v156, %v211
    %v214 = vadd.f32 %v209, %v212
    %v215 = vadd.f32 %v210, %v213
    %v216 = vstv %s35
    %v217 = vmul.f32 %v158, %v216
    %v218 = vmul.f32 %v159, %v216
    %v219 = vadd.f32 %v214, %v217
    %v220 = vadd.f32 %v215, %v218
    %v221 = vstv %s37
    %v222 = vadd.f32 %v219, %v221
    %v223 = vadd.f32 %v220, %v221
    %v224 = vtanh.pop %v222
    %v225 = vtanh.pop %v223
    %v226 = vstv %s38
    %v227 = vmul.f32 %v191, %v226
    %v228 = vmul.f32 %v192, %v226
    %v229 = vstv %s39
    %v230 = vmul.f32 %v224, %v229
    %v231 = vmul.f32 %v225, %v229
    %v232 = vadd.f32 %v227, %v230
    %v233 = vadd.f32 %v228, %v231
    %v234 = vstv %s42
    %v235 = vadd.f32 %v232, %v234
    %v236 = vadd.f32 %v233, %v234
    %v237 = vtanh.pop %v235
    %v238 = vtanh.pop %v236
    %v239 = vstv %s40
    %v240 = vmul.f32 %v191, %v239
    %v241 = vmul.f32 %v192, %v239
    %v242 = vstv %s41
    %v243 = vmul.f32 %v224, %v242
    %v244 = vmul.f32 %v225, %v242
    %v245 = vadd.f32 %v240, %v243
    %v246 = vadd.f32 %v241, %v244
    %v247 = vstv %s43
    %v248 = vadd.f32 %v245, %v247
    %v249 = vadd.f32 %v246, %v247
    %v250 = vtanh.pop %v248
    %v251 = vtanh.pop %v249
    %v252 = vstv %s44
    %v253 = vmul.f32 %v237, %v252
    %v254 = vmul.f32 %v238, %v252
    %v255 = vstv %s45
    %v256 = vmul.f32 %v250, %v255
    %v257 = vmul.f32 %v251, %v255
    %v258 = vadd.f32 %v253, %v256
    %v259 = vadd.f32 %v254, %v257
    %v260 = vstv %s48
    %v261 = vadd.f32 %v258, %v260
    %v262 = vadd.f32 %v259, %v260
    %v263 = vtanh.pop %v261
    %v264 = vtanh.pop %v262
    %v265 = vstv %s46
    %v266 = vmul.f32 %v237, %v265
    %v267 = vmul.f32 %v238, %v265
    %v268 = vstv %s47
    %v269 = vmul.f32 %v250, %v268
    %v270 = vmul.f32 %v251, %v268
    %v271 = vadd.f32 %v266, %v269
    %v272 = vadd.f32 %v267, %v270
    %v273 = vstv %s49
    %v274 = vadd.f32 %v271, %v273
    %v275 = vadd.f32 %v272, %v273
    %v276 = vtanh.pop %v274
    %v277 = vtanh.pop %v275
    %v278 = vstv %s50
    %v279 = vmul.f32 %v263, %v278
    %v280 = vmul.f32 %v264, %v278
    %v281 = vstv %s51
    %v282 = vmul.f32 %v276, %v281
    %v283 = vmul.f32 %v277, %v281
    %v284 = vadd.f32 %v279, %v282
    %v285 = vadd.f32 %v280, %v283
    %v286 = vstv %s142
    %v287 = vadd.f32 %v284, %v286
    %v288 = vadd.f32 %v285, %v286
    %v289 = vstv %s52
    %v290 = vmul.f32 %v143, %v289
    %v291 = vmul.f32 %v144, %v289
    %v292 = vstv %s53
    %v293 = vmul.f32 %v146, %v292
    %v294 = vmul.f32 %v147, %v292
    %v295 = vadd.f32 %v290, %v293
    %v296 = vadd.f32 %v291, %v294
    %v297 = vstv %s54
    %v298 = vmul.f32 %v149, %v297
    %v299 = vmul.f32 %v150, %v297
    %v300 = vadd.f32 %v295, %v298
    %v301 = vadd.f32 %v296, %v299
    %v302 = vstv %s55
    %v303 = vmul.f32 %v152, %v302
    %v304 = vmul.f32 %v153, %v302
    %v305 = vadd.f32 %v300, %v303
    %v306 = vadd.f32 %v301, %v304
    %v307 = vstv %s56
    %v308 = vmul.f32 %v155, %v307
    %v309 = vmul.f32 %v156, %v307
    %v310 = vadd.f32 %v305, %v308
    %v311 = vadd.f32 %v306, %v309
    %v312 = vstv %s57
    %v313 = vmul.f32 %v158, %v312
    %v314 = vmul.f32 %v159, %v312
    %v315 = vadd.f32 %v310, %v313
    %v316 = vadd.f32 %v311, %v314
    %v317 = vstv %s118
    %v318 = vadd.f32 %v315, %v317
    %v319 = vadd.f32 %v316, %v317
    %v320 = vtanh.pop %v318
    %v321 = vtanh.pop %v319
    %v322 = vstv %s129
    %v323 = vmul.f32 %v320, %v322
    %v324 = vmul.f32 %v321, %v322
    %v325 = vadd.f32 %v287, %v323
    %v326 = vadd.f32 %v288, %v324
    %v327 = vstv %s58
    %v328 = vmul.f32 %v143, %v327
    %v329 = vmul.f32 %v144, %v327
    %v330 = vstv %s59
    %v331 = vmul.f32 %v146, %v330
    %v332 = vmul.f32 %v147, %v330
    %v333 = vadd.f32 %v328, %v331
    %v334 = vadd.f32 %v329, %v332
    %v335 = vstv %s60
    %v336 = vmul.f32 %v149, %v335
    %v337 = vmul.f32 %v150, %v335
    %v338 = vadd.f32 %v333, %v336
    %v339 = vadd.f32 %v334, %v337
    %v340 = vstv %s61
    %v341 = vmul.f32 %v152, %v340
    %v342 = vmul.f32 %v153, %v340
    %v343 = vadd.f32 %v338, %v341
    %v344 = vadd.f32 %v339, %v342
    %v345 = vstv %s62
    %v346 = vmul.f32 %v155, %v345
    %v347 = vmul.f32 %v156, %v345
    %v348 = vadd.f32 %v343, %v346
    %v349 = vadd.f32 %v344, %v347
    %v350 = vstv %s63
    %v351 = vmul.f32 %v158, %v350
    %v352 = vmul.f32 %v159, %v350
    %v353 = vadd.f32 %v348, %v351
    %v354 = vadd.f32 %v349, %v352
    %v355 = vstv %s119
    %v356 = vadd.f32 %v353, %v355
    %v357 = vadd.f32 %v354, %v355
    %v358 = vtanh.pop %v356
    %v359 = vtanh.pop %v357
    %v360 = vstv %s130
    %v361 = vmul.f32 %v358, %v360
    %v362 = vmul.f32 %v359, %v360
    %v363 = vadd.f32 %v325, %v361
    %v364 = vadd.f32 %v326, %v362
    %v365 = vstv %s64
    %v366 = vmul.f32 %v143, %v365
    %v367 = vmul.f32 %v144, %v365
    %v368 = vstv %s65
    %v369 = vmul.f32 %v146, %v368
    %v370 = vmul.f32 %v147, %v368
    %v371 = vadd.f32 %v366, %v369
    %v372 = vadd.f32 %v367, %v370
    %v373 = vstv %s66
    %v374 = vmul.f32 %v149, %v373
    %v375 = vmul.f32 %v150, %v373
    %v376 = vadd.f32 %v371, %v374
    %v377 = vadd.f32 %v372, %v375
    %v378 = vstv %s67
    %v379 = vmul.f32 %v152, %v378
    %v380 = vmul.f32 %v153, %v378
    %v381 = vadd.f32 %v376, %v379
    %v382 = vadd.f32 %v377, %v380
    %v383 = vstv %s68
    %v384 = vmul.f32 %v155, %v383
    %v385 = vmul.f32 %v156, %v383
    %v386 = vadd.f32 %v381, %v384
    %v387 = vadd.f32 %v382, %v385
    %v388 = vstv %s69
    %v389 = vmul.f32 %v158, %v388
    %v390 = vmul.f32 %v159, %v388
    %v391 = vadd.f32 %v386, %v389
    %v392 = vadd.f32 %v387, %v390
    %v393 = vstv %s120
    %v394 = vadd.f32 %v391, %v393
    %v395 = vadd.f32 %v392, %v393
    %v396 = vtanh.pop %v394
    %v397 = vtanh.pop %v395
    %v398 = vstv %s131
    %v399 = vmul.f32 %v396, %v398
    %v400 = vmul.f32 %v397, %v398
    %v401 = vadd.f32 %v363, %v399
    %v402 = vadd.f32 %v364, %v400
    %v403 = vstv %s70
    %v404 = vmul.f32 %v143, %v403
    %v405 = vmul.f32 %v144, %v403
    %v406 = vstv %s71
    %v407 = vmul.f32 %v146, %v406
    %v408 = vmul.f32 %v147, %v406
    %v409 = vadd.f32 %v404, %v407
    %v410 = vadd.f32 %v405, %v408
    %v411 = vstv %s72
    %v412 = vmul.f32 %v149, %v411
    %v413 = vmul.f32 %v150, %v411
    %v414 = vadd.f32 %v409, %v412
    %v415 = vadd.f32 %v410, %v413
    %v416 = vstv %s73
    %v417 = vmul.f32 %v152, %v416
    %v418 = vmul.f32 %v153, %v416
    %v419 = vadd.f32 %v414, %v417
    %v420 = vadd.f32 %v415, %v418
    %v421 = vstv %s74
    %v422 = vmul.f32 %v155, %v421
    %v423 = vmul.f32 %v156, %v421
    %v424 = vadd.f32 %v419, %v422
    %v425 = vadd.f32 %v420, %v423
    %v426 = vstv %s75
    %v427 = vmul.f32 %v158, %v426
    %v428 = vmul.f32 %v159, %v426
    %v429 = vadd.f32 %v424, %v427
    %v430 = vadd.f32 %v425, %v428
    %v431 = vstv %s121
    %v432 = vadd.f32 %v429, %v431
    %v433 = vadd.f32 %v430, %v431
    %v434 = vtanh.pop %v432
    %v435 = vtanh.pop %v433
    %v436 = vstv %s132
    %v437 = vmul.f32 %v434, %v436
    %v438 = vmul.f32 %v435, %v436
    %v439 = vadd.f32 %v401, %v437
    %v440 = vadd.f32 %v402, %v438
    %v441 = vstv %s76
    %v442 = vmul.f32 %v143, %v441
    %v443 = vmul.f32 %v144, %v441
    %v444 = vstv %s77
    %v445 = vmul.f32 %v146, %v444
    %v446 = vmul.f32 %v147, %v444
    %v447 = vadd.f32 %v442, %v445
    %v448 = vadd.f32 %v443, %v446
    %v449 = vstv %s78
    %v450 = vmul.f32 %v149, %v449
    %v451 = vmul.f32 %v150, %v449
    %v452 = vadd.f32 %v447, %v450
    %v453 = vadd.f32 %v448, %v451
    %v454 = vstv %s79
    %v455 = vmul.f32 %v152, %v454
    %v456 = vmul.f32 %v153, %v454
    %v457 = vadd.f32 %v452, %v455
    %v458 = vadd.f32 %v453, %v456
    %v459 = vstv %s80
    %v460 = vmul.f32 %v155, %v459
    %v461 = vmul.f32 %v156, %v459
    %v462 = vadd.f32 %v457, %v460
    %v463 = vadd.f32 %v458, %v461
    %v464 = vstv %s81
    %v465 = vmul.f32 %v158, %v464
    %v466 = vmul.f32 %v159, %v464
    %v467 = vadd.f32 %v462, %v465
    %v468 = vadd.f32 %v463, %v466
    %v469 = vstv %s122
    %v470 = vadd.f32 %v467, %v469
    %v471 = vadd.f32 %v468, %v469
    %v472 = vtanh.pop %v470
    %v473 = vtanh.pop %v471
    %v474 = vstv %s133
    %v475 = vmul.f32 %v472, %v474
    %v476 = vmul.f32 %v473, %v474
    %v477 = vadd.f32 %v439, %v475
    %v478 = vadd.f32 %v440, %v476
    %v479 = vstv %s82
    %v480 = vmul.f32 %v143, %v479
    %v481 = vmul.f32 %v144, %v479
    %v482 = vstv %s83
    %v483 = vmul.f32 %v146, %v482
    %v484 = vmul.f32 %v147, %v482
    %v485 = vadd.f32 %v480, %v483
    %v486 = vadd.f32 %v481, %v484
    %v487 = vstv %s84
    %v488 = vmul.f32 %v149, %v487
    %v489 = vmul.f32 %v150, %v487
    %v490 = vadd.f32 %v485, %v488
    %v491 = vadd.f32 %v486, %v489
    %v492 = vstv %s85
    %v493 = vmul.f32 %v152, %v492
    %v494 = vmul.f32 %v153, %v492
    %v495 = vadd.f32 %v490, %v493
    %v496 = vadd.f32 %v491, %v494
    %v497 = vstv %s86
    %v498 = vmul.f32 %v155, %v497
    %v499 = vmul.f32 %v156, %v497
    %v500 = vadd.f32 %v495, %v498
    %v501 = vadd.f32 %v496, %v499
    %v502 = vstv %s87
    %v503 = vmul.f32 %v158, %v502
    %v504 = vmul.f32 %v159, %v502
    %v505 = vadd.f32 %v500, %v503
    %v506 = vadd.f32 %v501, %v504
    %v507 = vstv %s123
    %v508 = vadd.f32 %v505, %v507
    %v509 = vadd.f32 %v506, %v507
    %v510 = vtanh.pop %v508
    %v511 = vtanh.pop %v509
    %v512 = vstv %s134
    %v513 = vmul.f32 %v510, %v512
    %v514 = vmul.f32 %v511, %v512
    %v515 = vadd.f32 %v477, %v513
    %v516 = vadd.f32 %v478, %v514
    %v517 = vstv %s88
    %v518 = vmul.f32 %v143, %v517
    %v519 = vmul.f32 %v144, %v517
    %v520 = vstv %s89
    %v521 = vmul.f32 %v146, %v520
    %v522 = vmul.f32 %v147, %v520
    %v523 = vadd.f32 %v518, %v521
    %v524 = vadd.f32 %v519, %v522
    %v525 = vstv %s90
    %v526 = vmul.f32 %v149, %v525
    %v527 = vmul.f32 %v150, %v525
    %v528 = vadd.f32 %v523, %v526
    %v529 = vadd.f32 %v524, %v527
    %v530 = vstv %s91
    %v531 = vmul.f32 %v152, %v530
    %v532 = vmul.f32 %v153, %v530
    %v533 = vadd.f32 %v528, %v531
    %v534 = vadd.f32 %v529, %v532
    %v535 = vstv %s92
    %v536 = vmul.f32 %v155, %v535
    %v537 = vmul.f32 %v156, %v535
    %v538 = vadd.f32 %v533, %v536
    %v539 = vadd.f32 %v534, %v537
    %v540 = vstv %s93
    %v541 = vmul.f32 %v158, %v540
    %v542 = vmul.f32 %v159, %v540
    %v543 = vadd.f32 %v538, %v541
    %v544 = vadd.f32 %v539, %v542
    %v545 = vstv %s124
    %v546 = vadd.f32 %v543, %v545
    %v547 = vadd.f32 %v544, %v545
    %v548 = vtanh.pop %v546
    %v549 = vtanh.pop %v547
    %v550 = vstv %s135
    %v551 = vmul.f32 %v548, %v550
    %v552 = vmul.f32 %v549, %v550
    %v553 = vadd.f32 %v515, %v551
    %v554 = vadd.f32 %v516, %v552
    %v555 = vstv %s94
    %v556 = vmul.f32 %v143, %v555
    %v557 = vmul.f32 %v144, %v555
    %v558 = vstv %s95
    %v559 = vmul.f32 %v146, %v558
    %v560 = vmul.f32 %v147, %v558
    %v561 = vadd.f32 %v556, %v559
    %v562 = vadd.f32 %v557, %v560
    %v563 = vstv %s96
    %v564 = vmul.f32 %v149, %v563
    %v565 = vmul.f32 %v150, %v563
    %v566 = vadd.f32 %v561, %v564
    %v567 = vadd.f32 %v562, %v565
    %v568 = vstv %s97
    %v569 = vmul.f32 %v152, %v568
    %v570 = vmul.f32 %v153, %v568
    %v571 = vadd.f32 %v566, %v569
    %v572 = vadd.f32 %v567, %v570
    %v573 = vstv %s98
    %v574 = vmul.f32 %v155, %v573
    %v575 = vmul.f32 %v156, %v573
    %v576 = vadd.f32 %v571, %v574
    %v577 = vadd.f32 %v572, %v575
    %v578 = vstv %s99
    %v579 = vmul.f32 %v158, %v578
    %v580 = vmul.f32 %v159, %v578
    %v581 = vadd.f32 %v576, %v579
    %v582 = vadd.f32 %v577, %v580
    %v583 = vstv %s125
    %v584 = vadd.f32 %v581, %v583
    %v585 = vadd.f32 %v582, %v583
    %v586 = vtanh.pop %v584
    %v587 = vtanh.pop %v585
    %v588 = vstv %s136
    %v589 = vmul.f32 %v586, %v588
    %v590 = vmul.f32 %v587, %v588
    %v591 = vadd.f32 %v553, %v589
    %v592 = vadd.f32 %v554, %v590
    %v593 = vstv %s100
    %v594 = vmul.f32 %v143, %v593
    %v595 = vmul.f32 %v144, %v593
    %v596 = vstv %s101
    %v597 = vmul.f32 %v146, %v596
    %v598 = vmul.f32 %v147, %v596
    %v599 = vadd.f32 %v594, %v597
    %v600 = vadd.f32 %v595, %v598
    %v601 = vstv %s102
    %v602 = vmul.f32 %v149, %v601
    %v603 = vmul.f32 %v150, %v601
    %v604 = vadd.f32 %v599, %v602
    %v605 = vadd.f32 %v600, %v603
    %v606 = vstv %s103
    %v607 = vmul.f32 %v152, %v606
    %v608 = vmul.f32 %v153, %v606
    %v609 = vadd.f32 %v604, %v607
    %v610 = vadd.f32 %v605, %v608
    %v611 = vstv %s104
    %v612 = vmul.f32 %v155, %v611
    %v613 = vmul.f32 %v156, %v611
    %v614 = vadd.f32 %v609, %v612
    %v615 = vadd.f32 %v610, %v613
    %v616 = vstv %s105
    %v617 = vmul.f32 %v158, %v616
    %v618 = vmul.f32 %v159, %v616
    %v619 = vadd.f32 %v614, %v617
    %v620 = vadd.f32 %v615, %v618
    %v621 = vstv %s126
    %v622 = vadd.f32 %v619, %v621
    %v623 = vadd.f32 %v620, %v621
    %v624 = vtanh.pop %v622
    %v625 = vtanh.pop %v623
    %v626 = vstv %s137
    %v627 = vmul.f32 %v624, %v626
    %v628 = vmul.f32 %v625, %v626
    %v629 = vadd.f32 %v591, %v627
    %v630 = vadd.f32 %v592, %v628
    %v631 = vstv %s106
    %v632 = vmul.f32 %v143, %v631
    %v633 = vmul.f32 %v144, %v631
    %v634 = vstv %s107
    %v635 = vmul.f32 %v146, %v634
    %v636 = vmul.f32 %v147, %v634
    %v637 = vadd.f32 %v632, %v635
    %v638 = vadd.f32 %v633, %v636
    %v639 = vstv %s108
    %v640 = vmul.f32 %v149, %v639
    %v641 = vmul.f32 %v150, %v639
    %v642 = vadd.f32 %v637, %v640
    %v643 = vadd.f32 %v638, %v641
    %v644 = vstv %s109
    %v645 = vmul.f32 %v152, %v644
    %v646 = vmul.f32 %v153, %v644
    %v647 = vadd.f32 %v642, %v645
    %v648 = vadd.f32 %v643, %v646
    %v649 = vstv %s110
    %v650 = vmul.f32 %v155, %v649
    %v651 = vmul.f32 %v156, %v649
    %v652 = vadd.f32 %v647, %v650
    %v653 = vadd.f32 %v648, %v651
    %v654 = vstv %s111
    %v655 = vmul.f32 %v158, %v654
    %v656 = vmul.f32 %v159, %v654
    %v657 = vadd.f32 %v652, %v655
    %v658 = vadd.f32 %v653, %v656
    %v659 = vstv %s127
    %v660 = vadd.f32 %v657, %v659
    %v661 = vadd.f32 %v658, %v659
    %v662 = vtanh.pop %v660
    %v663 = vtanh.pop %v661
    %v664 = vstv %s138
    %v665 = vmul.f32 %v662, %v664
    %v666 = vmul.f32 %v663, %v664
    %v667 = vadd.f32 %v629, %v665
    %v668 = vadd.f32 %v630, %v666
    %v669 = vstv %s112
    %v670 = vmul.f32 %v143, %v669
    %v671 = vmul.f32 %v144, %v669
    %v672 = vstv %s113
    %v673 = vmul.f32 %v146, %v672
    %v674 = vmul.f32 %v147, %v672
    %v675 = vadd.f32 %v670, %v673
    %v676 = vadd.f32 %v671, %v674
    %v677 = vstv %s114
    %v678 = vmul.f32 %v149, %v677
    %v679 = vmul.f32 %v150, %v677
    %v680 = vadd.f32 %v675, %v678
    %v681 = vadd.f32 %v676, %v679
    %v682 = vstv %s115
    %v683 = vmul.f32 %v152, %v682
    %v684 = vmul.f32 %v153, %v682
    %v685 = vadd.f32 %v680, %v683
    %v686 = vadd.f32 %v681, %v684
    %v687 = vstv %s116
    %v688 = vmul.f32 %v155, %v687
    %v689 = vmul.f32 %v156, %v687
    %v690 = vadd.f32 %v685, %v688
    %v691 = vadd.f32 %v686, %v689
    %v692 = vstv %s117
    %v693 = vmul.f32 %v158, %v692
    %v694 = vmul.f32 %v159, %v692
    %v695 = vadd.f32 %v690, %v693
    %v696 = vadd.f32 %v691, %v694
    %v697 = vstv %s128
    %v698 = vadd.f32 %v695, %v697
    %v699 = vadd.f32 %v696, %v697
    %v700 = vtanh.pop %v698
    %v701 = vtanh.pop %v699
    %v702 = vstv %s139
    %v703 = vmul.f32 %v700, %v702
    %v704 = vmul.f32 %v701, %v702
    %v705 = vadd.f32 %v667, %v703
    %v706 = vadd.f32 %v668, %v704
    %707 = vst [vmem:[%s2] sm:$0xff] %v705
    %708 = vst [vmem:[%s2 + $0x8] sm:$0xff] %v706
    // Predicated region
    $region14: #{iawd_forward.3} parent=1 // pred_check
      _
    $region15: #{iawd_forward.3} parent=1 // pred_check_branch
      %710 = sbr.rel (0) target = $region17
    $region16: #{iawd_forward.3} parent=1 // pred_region
      _
    $region17: #{iawd_forward.3} parent=1 // pred_fallthru
      _
    // Predicated region
    $region18: #{iawd_forward.3} parent=1 // pred_check
      _
    $region19: #{iawd_forward.3} parent=1 // pred_check_branch
      %712 = sbr.rel (0) target = $region21
    $region20: #{iawd_forward.3} parent=1 // pred_region
      _
    $region21: #{iawd_forward.3} parent=1 // pred_fallthru
      _
    %713 = vsyncpa [#allocation3], 1

</llo_original>
